<compile_context>
chip_gen: v5e
topology: v5e:2x2
jax: 0.10.0
libtpu: 0.0.40
codegen_flags: <defaults>
</compile_context>

<pallas_src>
import functools

import jax
import jax.numpy as jnp
from jax import lax
from jax.experimental import pallas as pl
from jax.experimental.pallas import tpu as pltpu


def _add_ln_kernel(x_ref, r_ref, w_ref, b_ref, o_ref, *, eps):
    """Eval mode: (dropout == identity) + residual add + LayerNorm over H."""
    s = x_ref[...].astype(jnp.float32) + r_ref[...].astype(jnp.float32)
    mu = jnp.mean(s, axis=-1, keepdims=True)
    d = s - mu
    var = jnp.mean(d * d, axis=-1, keepdims=True)
    inv = lax.rsqrt(var + eps)
    y = d * inv * w_ref[...].astype(jnp.float32) + b_ref[...].astype(jnp.float32)
    o_ref[...] = y.astype(o_ref.dtype)


def _dropout_add_ln_kernel(bits_ref, x_ref, r_ref, w_ref, b_ref, o_ref,
                           *, keep_thresh, keep_scale, eps):
    """Training mode: dropout(x) (integer-threshold mask) + residual + LayerNorm."""
    x = x_ref[...].astype(jnp.float32)
    keep = bits_ref[...] < jnp.uint32(keep_thresh)          # P(keep) = 1 - p
    x = jnp.where(keep, x * keep_scale, 0.0)

    s = x + r_ref[...].astype(jnp.float32)
    mu = jnp.mean(s, axis=-1, keepdims=True)
    d = s - mu
    var = jnp.mean(d * d, axis=-1, keepdims=True)
    inv = lax.rsqrt(var + eps)
    y = d * inv * w_ref[...].astype(jnp.float32) + b_ref[...].astype(jnp.float32)
    o_ref[...] = y.astype(o_ref.dtype)


def dropout_add_layernorm(x193, x190, weight, bias, *, p=0.1, training=False,
                          eps=1e-12, rng_key=None, tile_rows=192):
    """Forward pass of M: LayerNorm(dropout(x193) + x190)."""
    B, S, H = x193.shape
    rows = B * S

    # Pick a row-tile that divides the row count (default 192 -> grid of 2 for
    # the (1, 384, 768) shape: one tile per TensorCore on v7x, two steps on v6e).
    if rows % tile_rows != 0:
        for cand in (192, 128, 96, 64, 32, 16, 8):
            if rows % cand == 0:
                tile_rows = cand
                break
        else:
            tile_rows = rows

    xa = x193.reshape(rows, H)
    xb = x190.reshape(rows, H)
    w2 = weight.reshape(1, H)
    b2 = bias.reshape(1, H)

    grid = (rows // tile_rows,)
    row_spec = pl.BlockSpec((tile_rows, H), lambda i: (i, 0))
    vec_spec = pl.BlockSpec((1, H), lambda i: (0, 0))

    if training and p > 0.0:
        # TODO(synk): torch's dropout RNG stream cannot be reproduced bit-exactly;
        # mask bits are generated host-side with jax.random (interpret-safe) and
        # compared against an integer threshold in-kernel.
        if rng_key is None:
            rng_key = jax.random.PRNGKey(0)
        bits = jax.random.bits(rng_key, (rows, H), dtype=jnp.uint32)
        keep_thresh = min(int(round((1.0 - p) * 2**32)), 2**32 - 1)
        kernel = functools.partial(_dropout_add_ln_kernel,
                                   keep_thresh=keep_thresh,
                                   keep_scale=float(1.0 / (1.0 - p)),
                                   eps=float(eps))
        in_specs = [row_spec, row_spec, row_spec, vec_spec, vec_spec]
        args = (bits, xa, xb, w2, b2)
    else:
        kernel = functools.partial(_add_ln_kernel, eps=float(eps))
        in_specs = [row_spec, row_spec, vec_spec, vec_spec]
        args = (xa, xb, w2, b2)

    out = pl.pallas_call(
        kernel,
        out_shape=jax.ShapeDtypeStruct((rows, H), x193.dtype),
        grid=grid,
        in_specs=in_specs,
        out_specs=row_spec,
        compiler_params=pltpu.CompilerParams(
            dimension_semantics=("parallel",)),
    )(*args)

    return out.reshape(B, S, H)


def _reference(x193, x190, weight, bias, eps=1e-12, drop_mask=None, keep_scale=1.0):
    x = x193 if drop_mask is None else jnp.where(drop_mask, x193 * keep_scale, 0.0)
    s = x + x190
    mu = jnp.mean(s, axis=-1, keepdims=True)
    var = jnp.mean((s - mu) ** 2, axis=-1, keepdims=True)
    return (s - mu) / jnp.sqrt(var + eps) * weight + bias


if __name__ == "__main__":
    key = jax.random.PRNGKey(0)
    k1, k2 = jax.random.split(key)

    B, S, H = 1, 384, 768
    x193 = jax.random.normal(k1, (B, S, H), dtype=jnp.float32)
    x190 = jax.random.normal(k2, (B, S, H), dtype=jnp.float32)

    # nn.LayerNorm(768, elementwise_affine=True) default init.
    weight = jnp.ones((H,), dtype=jnp.float32)
    bias = jnp.zeros((H,), dtype=jnp.float32)

    # --- eval mode (dropout = identity), checked against pure-JAX reference ---
    out_eval = dropout_add_layernorm(x193, x190, weight, bias,
                                     p=0.1, training=False)
    out_eval = jax.block_until_ready(out_eval)
    ref_eval = _reference(x193, x190, weight, bias)
    assert out_eval.shape == (B, S, H)
    assert jnp.max(jnp.abs(out_eval - ref_eval)) < 1e-4

    # --- training mode (host-generated mask bits), checked exactly -----------
    drop_key = jax.random.PRNGKey(1234)
    out_train = dropout_add_layernorm(x193, x190, weight, bias,
                                      p=0.1, training=True, rng_key=drop_key)
    out_train = jax.block_until_ready(out_train)

    bits_ref = jax.random.bits(drop_key, (B * S, H), dtype=jnp.uint32)
    keep_ref = (bits_ref < jnp.uint32(round(0.9 * 2**32))).reshape(B, S, H)
    ref_train = _reference(x193, x190, weight, bias,
                           drop_mask=keep_ref, keep_scale=1.0 / 0.9)
    assert out_train.shape == (B, S, H)
    assert bool(jnp.all(jnp.isfinite(out_train)))
    assert jnp.max(jnp.abs(out_train - ref_train)) < 1e-4

    print("KERNEL_OK")
</pallas_src>

<mosaic_0001>
module attributes {stable_mosaic.version = 11 : i64} {
  func.func @_add_ln_kernel(%arg0: i32, %arg1: memref<192x768xf32, #tpu.memory_space<vmem>>, %arg2: memref<192x768xf32, #tpu.memory_space<vmem>>, %arg3: memref<1x768xf32, #tpu.memory_space<vmem>>, %arg4: memref<1x768xf32, #tpu.memory_space<vmem>>, %arg5: memref<192x768xf32, #tpu.memory_space<vmem>>) attributes {dimension_semantics = [#tpu.dimension_semantics<parallel>], iteration_bounds = array<i64: 2>, scalar_prefetch = 0 : i64, scratch_operands = 0 : i64, tpu.core_type = #tpu.core_type<tc>, window_params = [{transform_indices = @transform_0, window_bounds = array<i64: 192, 768>}, {transform_indices = @transform_1, window_bounds = array<i64: 192, 768>}, {pipeline_mode = #tpu.pipeline_mode<synchronous>, transform_indices = @transform_2, window_bounds = array<i64: 1, 768>}, {pipeline_mode = #tpu.pipeline_mode<synchronous>, transform_indices = @transform_3, window_bounds = array<i64: 1, 768>}, {transform_indices = @transform_4, window_bounds = array<i64: 192, 768>}]} {
    %c0 = arith.constant 0 : index
    %c0_0 = arith.constant 0 : index
    %0 = vector.load %arg1[%c0, %c0_0] : memref<192x768xf32, #tpu.memory_space<vmem>>, vector<192x768xf32>
    %c0_1 = arith.constant 0 : index
    %c0_2 = arith.constant 0 : index
    %1 = vector.load %arg2[%c0_1, %c0_2] : memref<192x768xf32, #tpu.memory_space<vmem>>, vector<192x768xf32>
    %2 = arith.addf %0, %1 : vector<192x768xf32>
    %cst = arith.constant dense<0.000000e+00> : vector<192xf32>
    %3 = vector.multi_reduction <add>, %2, %cst [1] : vector<192x768xf32> to vector<192xf32>
    %4 = vector.shape_cast %3 : vector<192xf32> to vector<192x1xf32>
    %cst_3 = arith.constant 7.680000e+02 : f32
    %5 = vector.broadcast %cst_3 : f32 to vector<192x1xf32>
    %6 = arith.divf %4, %5 : vector<192x1xf32>
    %7 = vector.broadcast %6 : vector<192x1xf32> to vector<192x768xf32>
    %8 = arith.subf %2, %7 : vector<192x768xf32>
    %9 = arith.mulf %8, %8 : vector<192x768xf32>
    %cst_4 = arith.constant dense<0.000000e+00> : vector<192xf32>
    %10 = vector.multi_reduction <add>, %9, %cst_4 [1] : vector<192x768xf32> to vector<192xf32>
    %11 = vector.shape_cast %10 : vector<192xf32> to vector<192x1xf32>
    %cst_5 = arith.constant 7.680000e+02 : f32
    %12 = vector.broadcast %cst_5 : f32 to vector<192x1xf32>
    %13 = arith.divf %11, %12 : vector<192x1xf32>
    %cst_6 = arith.constant 9.99999996E-13 : f32
    %14 = vector.broadcast %cst_6 : f32 to vector<192x1xf32>
    %15 = arith.addf %13, %14 : vector<192x1xf32>
    %16 = math.rsqrt %15 : vector<192x1xf32>
    %17 = vector.broadcast %16 : vector<192x1xf32> to vector<192x768xf32>
    %18 = arith.mulf %8, %17 : vector<192x768xf32>
    %c0_7 = arith.constant 0 : index
    %c0_8 = arith.constant 0 : index
    %19 = vector.load %arg3[%c0_7, %c0_8] : memref<1x768xf32, #tpu.memory_space<vmem>>, vector<1x768xf32>
    %20 = vector.broadcast %19 : vector<1x768xf32> to vector<192x768xf32>
    %21 = arith.mulf %18, %20 : vector<192x768xf32>
    %c0_9 = arith.constant 0 : index
    %c0_10 = arith.constant 0 : index
    %22 = vector.load %arg4[%c0_9, %c0_10] : memref<1x768xf32, #tpu.memory_space<vmem>>, vector<1x768xf32>
    %23 = vector.broadcast %22 : vector<1x768xf32> to vector<192x768xf32>
    %24 = arith.addf %21, %23 : vector<192x768xf32>
    %c0_11 = arith.constant 0 : index
    %c0_12 = arith.constant 0 : index
    %25 = vector.load %arg5[%c0_11, %c0_12] : memref<192x768xf32, #tpu.memory_space<vmem>>, vector<192x768xf32>
    tpu.vector_store %arg5[%c0_11, %c0_12], %24 {strides = array<i32>} : memref<192x768xf32, #tpu.memory_space<vmem>>, vector<192x768xf32>,
    return
  }
  func.func @transform_0(%arg0: i32) -> (i32, i32) {
    %c0_i32 = arith.constant 0 : i32
    %c0_i32_0 = arith.constant 0 : i32
    return %arg0, %c0_i32 : i32, i32
  }
  func.func @transform_1(%arg0: i32) -> (i32, i32) {
    %c0_i32 = arith.constant 0 : i32
    %c0_i32_0 = arith.constant 0 : i32
    return %arg0, %c0_i32 : i32, i32
  }
  func.func @transform_2(%arg0: i32) -> (i32, i32) {
    %c0_i32 = arith.constant 0 : i32
    %c0_i32_0 = arith.constant 0 : i32
    %c0_i32_1 = arith.constant 0 : i32
    return %c0_i32, %c0_i32_0 : i32, i32
  }
  func.func @transform_3(%arg0: i32) -> (i32, i32) {
    %c0_i32 = arith.constant 0 : i32
    %c0_i32_0 = arith.constant 0 : i32
    %c0_i32_1 = arith.constant 0 : i32
    return %c0_i32, %c0_i32_0 : i32, i32
  }
  func.func @transform_4(%arg0: i32) -> (i32, i32) {
    %c0_i32 = arith.constant 0 : i32
    %c0_i32_0 = arith.constant 0 : i32
    return %arg0, %c0_i32 : i32, i32
  }
}

</mosaic_0001>

<llo_original>
// kernel: tpu_custom_call.1
$region0: #{tpu_custom_call.1}
  #allocation0 [shape = 'u32[]', space=smem, size = 0x4, offset = 0x4, fixed_abs, tag = 'smem constant byte address 0x4 - core index']
  #allocation1 [shape = 'u32[72,128]{1,0:T(1,128)}', space=vmem, size = 0x9000, scoped, tag = 'internal scratch']
  %s0 = inlined_call_operand.hbm [shape: f32[384,768], index: 0, kind: input, shape index: {}]
  %s1 = inlined_call_operand.hbm [shape: f32[384,768], index: 1, kind: input, shape index: {}]
  %s2 = inlined_call_operand.hbm [shape: f32[1,768], index: 2, kind: input, shape index: {}]
  %s3 = inlined_call_operand.hbm [shape: f32[1,768], index: 3, kind: input, shape index: {}]
  %s4 = inlined_call_operand.hbm [shape: f32[384,768], index: 4, kind: output, shape index: {}]
  %s5 = sld [smem:[#allocation0]]
  $region65: #{tpu_custom_call.1} parent=0
    _
  %s7 = ssub.s32 1, %s5
  %s8 = scalar_select 0, %s7, %s5
  $region1: #{tpu_custom_call.1} parent=0
    #allocation2 [shape = 'u8[1179648]{0}', space=vmem, size = 0x120000, scoped, tag = 'input window, operand 0']
    #allocation3 [shape = 's32[2]{0}', space=sflag, size = 0x8, scoped, tag = 'scoped memory for tpu_custom_call.1']
    #allocation4 [shape = 's32[2]{0}', space=sflag, size = 0x8, scoped, tag = 'scoped memory for tpu_custom_call.1']
    #allocation5 [shape = 'u8[1179648]{0}', space=vmem, size = 0x120000, scoped, tag = 'input window, operand 1']
    #allocation6 [shape = 's32[2]{0}', space=sflag, size = 0x8, scoped, tag = 'scoped memory for tpu_custom_call.1']
    #allocation7 [shape = 'u8[3072]{0}', space=vmem, size = 0xc00, scoped, tag = 'input window, operand 2, single buffered']
    #allocation8 [shape = 'u8[3072]{0}', space=vmem, size = 0xc00, scoped, tag = 'input window, operand 3, single buffered']
    #allocation9 [shape = 's32[1]{0}', space=sflag, size = 0x4, scoped, tag = 'scoped memory for tpu_custom_call.1']
    #allocation10 [shape = 'u8[1179648]{0}', space=vmem, size = 0x120000, scoped, tag = 'output window, operand 0']
    %9 = vsyncpa [#allocation3], 0
    %s10 = scalar_lea.sflag [#allocation3], 1
    %11 = vsyncpa %s10, 0
    %12 = vsyncpa [#allocation6], 0
    %s13 = scalar_lea.sflag [#allocation6], 1
    %14 = vsyncpa %s13, 0
    %15 = vsyncpa [#allocation9], 0
    %16 = vsyncpa [#allocation4], 0
    %s17 = scalar_lea.sflag [#allocation4], 1
    %18 = vsyncpa %s17, 0
    loop: start=0, step=1, limit=4
    $region2: #{tpu_custom_call.1} parent=1 // loop_pre_header
      _
    $region3: #{tpu_custom_call.1} parent=1 // loop_header
      %s20 = sphi 0, %s24
      %p21 = scmp.ge.s32.totalorder %s20, 4
      %s30 = sphi 0, %s32
      %s33 = sphi 0, %s30
      %s34 = sphi 0, %s33
      %s50 = sphi 0, %s34
      %s56 = sphi 0, %s58
      %s59 = sphi 0, %s56
      %s60 = sphi 0, %s59
      %s76 = sphi 0, %s60
      %s80 = sphi 0, %s80
      %s82 = sphi 0, %s80
      %s83 = sphi 0, %s82
      %s97 = sphi 0, %s83
      %s101 = sphi 0, %s101
      %s103 = sphi 0, %s101
      %s104 = sphi 0, %s103
      %s118 = sphi 0, %s104
      %s124 = sphi 0, %s126
      %s127 = sphi 0, %s124
      %s128 = sphi 0, %s127
      %s144 = sphi 0, %s128
    $region4: #{tpu_custom_call.1} parent=1 // loop_header_branch
      %23 = sbr.rel (%p21) target = $region8
    $region5: #{tpu_custom_call.1} parent=1 // loop_body
      %s25 = ssub.s32 %s20, 1
      %s26 = ssub.s32 %s20, 2
      %s27 = sadd.s32 %s20, 1
      %s28 = ssub.s32 %s20, %s27
      %p29 = scmp.eq.s32.totalorder %s28, 0
      %s31 = sadd.s32 %s30, 1
      %s32 = scalar_select %p29, %s30, %s31
      %p35 = pneg %p29
      %p36 = scmp.eq.s32.totalorder %s20, 1
      %p37 = por %p35, %p36
      %p38 = scmp.ne.s32.totalorder %s30, %s33
      %p39 = scmp.eq.s32.totalorder %s20, 0
      %p40 = por %p38, %p39
      %p41 = scmp.ne.s32.totalorder %s30, %s33
      %p42 = scmp.eq.s32.totalorder %s25, 1
      %p43 = por %p41, %p42
      %p44 = scmp.ne.s32.totalorder %s33, %s34
      %p45 = scmp.eq.s32.totalorder %s25, 0
      %p46 = por %p44, %p45
      %p47 = scmp.ne.s32.totalorder %s33, %s34
      %p48 = scmp.eq.s32.totalorder %s26, 1
      %p49 = por %p47, %p48
      %p51 = scmp.ne.s32.totalorder %s34, %s50
      %p52 = scmp.eq.s32.totalorder %s26, 0
      %p53 = por %p51, %p52
      %s54 = ssub.s32 %s20, %s27
      %p55 = scmp.eq.s32.totalorder %s54, 0
      %s57 = sadd.s32 %s56, 1
      %s58 = scalar_select %p55, %s56, %s57
      %p61 = pneg %p55
      %p62 = scmp.eq.s32.totalorder %s20, 1
      %p63 = por %p61, %p62
      %p64 = scmp.ne.s32.totalorder %s56, %s59
      %p65 = scmp.eq.s32.totalorder %s20, 0
      %p66 = por %p64, %p65
      %p67 = scmp.ne.s32.totalorder %s56, %s59
      %p68 = scmp.eq.s32.totalorder %s25, 1
      %p69 = por %p67, %p68
      %p70 = scmp.ne.s32.totalorder %s59, %s60
      %p71 = scmp.eq.s32.totalorder %s25, 0
      %p72 = por %p70, %p71
      %p73 = scmp.ne.s32.totalorder %s59, %s60
      %p74 = scmp.eq.s32.totalorder %s26, 1
      %p75 = por %p73, %p74
      %p77 = scmp.ne.s32.totalorder %s60, %s76
      %p78 = scmp.eq.s32.totalorder %s26, 0
      %p79 = por %p77, %p78
      %s81 = sadd.s32 %s80, 1
      %p84 = scmp.eq.s32.totalorder %s20, 1
      %p85 = scmp.ne.s32.totalorder %s80, %s82
      %p86 = scmp.eq.s32.totalorder %s20, 0
      %p87 = por %p85, %p86
      %p88 = scmp.ne.s32.totalorder %s80, %s82
      %p89 = scmp.eq.s32.totalorder %s25, 1
      %p90 = por %p88, %p89
      %p91 = scmp.ne.s32.totalorder %s82, %s83
      %p92 = scmp.eq.s32.totalorder %s25, 0
      %p93 = por %p91, %p92
      %p94 = scmp.ne.s32.totalorder %s82, %s83
      %p95 = scmp.eq.s32.totalorder %s26, 1
      %p96 = por %p94, %p95
      %p98 = scmp.ne.s32.totalorder %s83, %s97
      %p99 = scmp.eq.s32.totalorder %s26, 0
      %p100 = por %p98, %p99
      %s102 = sadd.s32 %s101, 1
      %p105 = scmp.eq.s32.totalorder %s20, 1
      %p106 = scmp.ne.s32.totalorder %s101, %s103
      %p107 = scmp.eq.s32.totalorder %s20, 0
      %p108 = por %p106, %p107
      %p109 = scmp.ne.s32.totalorder %s101, %s103
      %p110 = scmp.eq.s32.totalorder %s25, 1
      %p111 = por %p109, %p110
      %p112 = scmp.ne.s32.totalorder %s103, %s104
      %p113 = scmp.eq.s32.totalorder %s25, 0
      %p114 = por %p112, %p113
      %p115 = scmp.ne.s32.totalorder %s103, %s104
      %p116 = scmp.eq.s32.totalorder %s26, 1
      %p117 = por %p115, %p116
      %p119 = scmp.ne.s32.totalorder %s104, %s118
      %p120 = scmp.eq.s32.totalorder %s26, 0
      %p121 = por %p119, %p120
      %s122 = ssub.s32 %s20, %s27
      %p123 = scmp.eq.s32.totalorder %s122, 0
      %s125 = sadd.s32 %s124, 1
      %s126 = scalar_select %p123, %s124, %s125
      %p129 = pneg %p123
      %p130 = scmp.eq.s32.totalorder %s20, 1
      %p131 = por %p129, %p130
      %p132 = scmp.ne.s32.totalorder %s124, %s127
      %p133 = scmp.eq.s32.totalorder %s20, 0
      %p134 = por %p132, %p133
      %p135 = scmp.ne.s32.totalorder %s124, %s127
      %p136 = scmp.eq.s32.totalorder %s25, 1
      %p137 = por %p135, %p136
      %p138 = scmp.ne.s32.totalorder %s127, %s128
      %p139 = scmp.eq.s32.totalorder %s25, 0
      %p140 = por %p138, %p139
      %p141 = scmp.ne.s32.totalorder %s127, %s128
      %p142 = scmp.eq.s32.totalorder %s26, 1
      %p143 = por %p141, %p142
      %p145 = scmp.ne.s32.totalorder %s128, %s144
      %p146 = scmp.eq.s32.totalorder %s26, 0
      %p147 = por %p145, %p146
      %p148 = scmp.le.s32.totalorder 1, %s20
      %p149 = scmp.lt.s32.totalorder %s20, 3
      %p150 = pnand %p148, %p149
      %p151 = pneg %p150
      // Predicated region
      $region9: #{tpu_custom_call.1} parent=5 // pred_check
        _
      $region10: #{tpu_custom_call.1} parent=5 // pred_check_branch
        %153 = sbr.rel (%p150) target = $region12
      $region11: #{tpu_custom_call.1} parent=5 // pred_region
        %s154 = ssub.s32 %s20, 1
        // Predicated region
        $region13: #{tpu_custom_call.1} parent=11 // pred_check
          %p155 = pneg %p93
        $region14: #{tpu_custom_call.1} parent=11 // pred_check_branch
          %157 = sbr.rel (%p155) target = $region16
        $region15: #{tpu_custom_call.1} parent=11 // pred_region
          %159 = vsyncadd [#allocation6], 0
          %s161 = sshll.u32 %s2, 4
          %s162 = int_to_ptr.hbm [resolvable:$true] %s161
          %s163 = sshll.u32 [#allocation7], 4
          %s164 = int_to_ptr.vmem [resolvable:$true] %s163
          %166 = dma.hbm_to_vmem [thread:$0]  %s162, 96, %s164, [#allocation6]
        $region16: #{tpu_custom_call.1} parent=11 // pred_fallthru
          _
        // Predicated region
        $region17: #{tpu_custom_call.1} parent=11 // pred_check
          %p167 = pneg %p114
        $region18: #{tpu_custom_call.1} parent=11 // pred_check_branch
          %169 = sbr.rel (%p167) target = $region20
        $region19: #{tpu_custom_call.1} parent=11 // pred_region
          %171 = vsyncadd [#allocation9], 0
          %s173 = sshll.u32 %s3, 4
          %s174 = int_to_ptr.hbm [resolvable:$true] %s173
          %s175 = sshll.u32 [#allocation8], 4
          %s176 = int_to_ptr.vmem [resolvable:$true] %s175
          %178 = dma.hbm_to_vmem [thread:$0]  %s174, 96, %s176, [#allocation9]
        $region20: #{tpu_custom_call.1} parent=11 // pred_fallthru
          _
      $region12: #{tpu_custom_call.1} parent=5 // pred_fallthru
        _
      %p179 = scmp.lt.s32.totalorder %s20, 2
      // Predicated region
      $region21: #{tpu_custom_call.1} parent=5 // pred_check
        %p180 = pneg %p179
      $region22: #{tpu_custom_call.1} parent=5 // pred_check_branch
        %182 = sbr.rel (%p180) target = $region24
      $region23: #{tpu_custom_call.1} parent=5 // pred_region
        // Predicated region
        $region25: #{tpu_custom_call.1} parent=23 // pred_check
          %p183 = pneg %p40
        $region26: #{tpu_custom_call.1} parent=23 // pred_check_branch
          %185 = sbr.rel (%p183) target = $region28
        $region27: #{tpu_custom_call.1} parent=23 // pred_region
          %s186 = sand.u32 %s30, 1
          %s187 = scalar_lea.sflag [#allocation3], %s186
          %s188 = sand.u32 %s30, 1
          %s189 = smul.addr %s188, 1152
          %s190 = scalar_lea.vmem [#allocation2], %s189
          %s191 = smul.u32 24, %s20
          %193 = vsyncadd %s187, 0
          %s194 = smul.addr %s191, 6
          %s195 = smul.addr %s194, 8
          %s196 = scalar_lea.hbm %s0, %s195
          %s197 = sshll.u32 %s196, 4
          %s198 = int_to_ptr.hbm [resolvable:$true] %s197
          %s199 = sshll.u32 %s190, 4
          %s200 = int_to_ptr.vmem [resolvable:$true] %s199
          %205 = dma.hbm_to_vmem [thread:$0]  %s198, 18432, %s200, %s187, 768, 768, 48
        $region28: #{tpu_custom_call.1} parent=23 // pred_fallthru
          _
        // Predicated region
        $region29: #{tpu_custom_call.1} parent=23 // pred_check
          %p206 = pneg %p66
        $region30: #{tpu_custom_call.1} parent=23 // pred_check_branch
          %208 = sbr.rel (%p206) target = $region32
        $region31: #{tpu_custom_call.1} parent=23 // pred_region
          %s209 = sand.u32 %s20, 1
          %s210 = scalar_lea.sflag [#allocation6], %s209
          %s211 = sand.u32 %s56, 1
          %s212 = smul.addr %s211, 1152
          %s213 = scalar_lea.vmem [#allocation5], %s212
          %s214 = smul.u32 24, %s20
          %216 = vsyncadd %s210, 0
          %s217 = smul.addr %s214, 6
          %s218 = smul.addr %s217, 8
          %s219 = scalar_lea.hbm %s1, %s218
          %s220 = sshll.u32 %s219, 4
          %s221 = int_to_ptr.hbm [resolvable:$true] %s220
          %s222 = sshll.u32 %s213, 4
          %s223 = int_to_ptr.vmem [resolvable:$true] %s222
          %228 = dma.hbm_to_vmem [thread:$0]  %s221, 18432, %s223, %s210, 768, 768, 48
        $region32: #{tpu_custom_call.1} parent=23 // pred_fallthru
          _
      $region24: #{tpu_custom_call.1} parent=5 // pred_fallthru
        _
      %p229 = scmp.le.s32.totalorder 1, %s20
      %p230 = scmp.lt.s32.totalorder %s20, 3
      %p231 = pnand %p229, %p230
      %p232 = pneg %p231
      // Predicated region
      $region33: #{tpu_custom_call.1} parent=5 // pred_check
        _
      $region34: #{tpu_custom_call.1} parent=5 // pred_check_branch
        %234 = sbr.rel (%p231) target = $region36
      $region35: #{tpu_custom_call.1} parent=5 // pred_region
        %s235 = ssub.s32 %s20, 1
        %s236 = sand.u32 %s33, 1
        %s237 = scalar_lea.sflag [#allocation3], %s236
        %s238 = sand.u32 %s33, 1
        %s239 = smul.addr %s238, 1152
        %s240 = scalar_lea.vmem [#allocation2], %s239
        // Predicated region
        $region37: #{tpu_custom_call.1} parent=35 // pred_check
          %p241 = pneg %p46
        $region38: #{tpu_custom_call.1} parent=35 // pred_check_branch
          %243 = sbr.rel (%p241) target = $region40
        $region39: #{tpu_custom_call.1} parent=35 // pred_region
          %245 = dma.done %s237, 18432
        $region40: #{tpu_custom_call.1} parent=35 // pred_fallthru
          _
        %s246 = sand.u32 %s25, 1
        %s247 = scalar_lea.sflag [#allocation6], %s246
        %s248 = sand.u32 %s59, 1
        %s249 = smul.addr %s248, 1152
        %s250 = scalar_lea.vmem [#allocation5], %s249
        // Predicated region
        $region41: #{tpu_custom_call.1} parent=35 // pred_check
          %p251 = pneg %p72
        $region42: #{tpu_custom_call.1} parent=35 // pred_check_branch
          %253 = sbr.rel (%p251) target = $region44
        $region43: #{tpu_custom_call.1} parent=35 // pred_region
          %255 = dma.done %s247, 18432
        $region44: #{tpu_custom_call.1} parent=35 // pred_fallthru
          _
        // Predicated region
        $region45: #{tpu_custom_call.1} parent=35 // pred_check
          %p256 = pneg %p93
        $region46: #{tpu_custom_call.1} parent=35 // pred_check_branch
          %258 = sbr.rel (%p256) target = $region48
        $region47: #{tpu_custom_call.1} parent=35 // pred_region
          %260 = dma.done [#allocation6], 96
        $region48: #{tpu_custom_call.1} parent=35 // pred_fallthru
          _
        // Predicated region
        $region49: #{tpu_custom_call.1} parent=35 // pred_check
          %p261 = pneg %p114
        $region50: #{tpu_custom_call.1} parent=35 // pred_check_branch
          %263 = sbr.rel (%p261) target = $region52
        $region51: #{tpu_custom_call.1} parent=35 // pred_region
          %265 = dma.done [#allocation9], 96
        $region52: #{tpu_custom_call.1} parent=35 // pred_fallthru
          _
        %s266 = sand.u32 %s33, 1
        %s267 = scalar_lea.sflag [#allocation3], %s266
        %s268 = sand.u32 %s33, 1
        %s269 = smul.addr %s268, 1152
        %s270 = scalar_lea.vmem [#allocation2], %s269
        %p271 = pneg %p46
        %p272 = pneg %p43
        %s273 = sand.u32 %s25, 1
        %s274 = scalar_lea.sflag [#allocation6], %s273
        %s275 = sand.u32 %s59, 1
        %s276 = smul.addr %s275, 1152
        %s277 = scalar_lea.vmem [#allocation5], %s276
        %p278 = pneg %p72
        %p279 = pneg %p69
        %p280 = pneg %p93
        %p281 = pneg %p90
        %p282 = pneg %p114
        %p283 = pneg %p111
        %p284 = pneg %p140
        %p285 = pneg %p137
        %s286 = sand.u32 %s127, 1
        %s287 = scalar_lea.sflag [#allocation4], %s286
        %s288 = sand.u32 %s127, 1
        %s289 = smul.addr %s288, 1152
        %s290 = scalar_lea.vmem [#allocation10], %s289
        %s291 = smul.u32 24, %s25
        %s292 = smul.u32 24, %s25
        %s293 = smul.u32 24, %s25
        %v294 = vld [vmem:[%s240] sm:$0xff]
        %v295 = vld [vmem:[%s240 + $0x8] sm:$0xff]
        %v296 = vld [vmem:[%s240 + $0x10] sm:$0xff]
        %v297 = vld [vmem:[%s240 + $0x18] sm:$0xff]
        %v298 = vld [vmem:[%s240 + $0x20] sm:$0xff]
        %v299 = vld [vmem:[%s240 + $0x28] sm:$0xff]
        %v300 = vld [vmem:[%s240 + $0x30] sm:$0xff]
        %v301 = vld [vmem:[%s240 + $0x38] sm:$0xff]
        %v302 = vld [vmem:[%s240 + $0x40] sm:$0xff]
        %v303 = vld [vmem:[%s240 + $0x48] sm:$0xff]
        %v304 = vld [vmem:[%s240 + $0x50] sm:$0xff]
        %v305 = vld [vmem:[%s240 + $0x58] sm:$0xff]
        %v306 = vld [vmem:[%s240 + $0x60] sm:$0xff]
        %v307 = vld [vmem:[%s240 + $0x68] sm:$0xff]
        %v308 = vld [vmem:[%s240 + $0x70] sm:$0xff]
        %v309 = vld [vmem:[%s240 + $0x78] sm:$0xff]
        %v310 = vld [vmem:[%s240 + $0x80] sm:$0xff]
        %v311 = vld [vmem:[%s240 + $0x88] sm:$0xff]
        %v312 = vld [vmem:[%s240 + $0x90] sm:$0xff]
        %v313 = vld [vmem:[%s240 + $0x98] sm:$0xff]
        %v314 = vld [vmem:[%s240 + $0xa0] sm:$0xff]
        %v315 = vld [vmem:[%s240 + $0xa8] sm:$0xff]
        %v316 = vld [vmem:[%s240 + $0xb0] sm:$0xff]
        %v317 = vld [vmem:[%s240 + $0xb8] sm:$0xff]
        %v318 = vld [vmem:[%s240 + $0xc0] sm:$0xff]
        %v319 = vld [vmem:[%s240 + $0xc8] sm:$0xff]
        %v320 = vld [vmem:[%s240 + $0xd0] sm:$0xff]
        %v321 = vld [vmem:[%s240 + $0xd8] sm:$0xff]
        %v322 = vld [vmem:[%s240 + $0xe0] sm:$0xff]
        %v323 = vld [vmem:[%s240 + $0xe8] sm:$0xff]
        %v324 = vld [vmem:[%s240 + $0xf0] sm:$0xff]
        %v325 = vld [vmem:[%s240 + $0xf8] sm:$0xff]
        %v326 = vld [vmem:[%s240 + $0x100] sm:$0xff]
        %v327 = vld [vmem:[%s240 + $0x108] sm:$0xff]
        %v328 = vld [vmem:[%s240 + $0x110] sm:$0xff]
        %v329 = vld [vmem:[%s240 + $0x118] sm:$0xff]
        %v330 = vld [vmem:[%s240 + $0x120] sm:$0xff]
        %v331 = vld [vmem:[%s240 + $0x128] sm:$0xff]
        %v332 = vld [vmem:[%s240 + $0x130] sm:$0xff]
        %v333 = vld [vmem:[%s240 + $0x138] sm:$0xff]
        %v334 = vld [vmem:[%s240 + $0x140] sm:$0xff]
        %v335 = vld [vmem:[%s240 + $0x148] sm:$0xff]
        %v336 = vld [vmem:[%s240 + $0x150] sm:$0xff]
        %v337 = vld [vmem:[%s240 + $0x158] sm:$0xff]
        %v338 = vld [vmem:[%s240 + $0x160] sm:$0xff]
        %v339 = vld [vmem:[%s240 + $0x168] sm:$0xff]
        %v340 = vld [vmem:[%s240 + $0x170] sm:$0xff]
        %v341 = vld [vmem:[%s240 + $0x178] sm:$0xff]
        %v342 = vld [vmem:[%s240 + $0x180] sm:$0xff]
        %v343 = vld [vmem:[%s240 + $0x188] sm:$0xff]
        %v344 = vld [vmem:[%s240 + $0x190] sm:$0xff]
        %v345 = vld [vmem:[%s240 + $0x198] sm:$0xff]
        %v346 = vld [vmem:[%s240 + $0x1a0] sm:$0xff]
        %v347 = vld [vmem:[%s240 + $0x1a8] sm:$0xff]
        %v348 = vld [vmem:[%s240 + $0x1b0] sm:$0xff]
        %v349 = vld [vmem:[%s240 + $0x1b8] sm:$0xff]
        %v350 = vld [vmem:[%s240 + $0x1c0] sm:$0xff]
        %v351 = vld [vmem:[%s240 + $0x1c8] sm:$0xff]
        %v352 = vld [vmem:[%s240 + $0x1d0] sm:$0xff]
        %v353 = vld [vmem:[%s240 + $0x1d8] sm:$0xff]
        %v354 = vld [vmem:[%s240 + $0x1e0] sm:$0xff]
        %v355 = vld [vmem:[%s240 + $0x1e8] sm:$0xff]
        %v356 = vld [vmem:[%s240 + $0x1f0] sm:$0xff]
        %v357 = vld [vmem:[%s240 + $0x1f8] sm:$0xff]
        %v358 = vld [vmem:[%s240 + $0x200] sm:$0xff]
        %v359 = vld [vmem:[%s240 + $0x208] sm:$0xff]
        %v360 = vld [vmem:[%s240 + $0x210] sm:$0xff]
        %v361 = vld [vmem:[%s240 + $0x218] sm:$0xff]
        %v362 = vld [vmem:[%s240 + $0x220] sm:$0xff]
        %v363 = vld [vmem:[%s240 + $0x228] sm:$0xff]
        %v364 = vld [vmem:[%s240 + $0x230] sm:$0xff]
        %v365 = vld [vmem:[%s240 + $0x238] sm:$0xff]
        %v366 = vld [vmem:[%s240 + $0x240] sm:$0xff]
        %v367 = vld [vmem:[%s240 + $0x248] sm:$0xff]
        %v368 = vld [vmem:[%s240 + $0x250] sm:$0xff]
        %v369 = vld [vmem:[%s240 + $0x258] sm:$0xff]
        %v370 = vld [vmem:[%s240 + $0x260] sm:$0xff]
        %v371 = vld [vmem:[%s240 + $0x268] sm:$0xff]
        %v372 = vld [vmem:[%s240 + $0x270] sm:$0xff]
        %v373 = vld [vmem:[%s240 + $0x278] sm:$0xff]
        %v374 = vld [vmem:[%s240 + $0x280] sm:$0xff]
        %v375 = vld [vmem:[%s240 + $0x288] sm:$0xff]
        %v376 = vld [vmem:[%s240 + $0x290] sm:$0xff]
        %v377 = vld [vmem:[%s240 + $0x298] sm:$0xff]
        %v378 = vld [vmem:[%s240 + $0x2a0] sm:$0xff]
        %v379 = vld [vmem:[%s240 + $0x2a8] sm:$0xff]
        %v380 = vld [vmem:[%s240 + $0x2b0] sm:$0xff]
        %v381 = vld [vmem:[%s240 + $0x2b8] sm:$0xff]
        %v382 = vld [vmem:[%s240 + $0x2c0] sm:$0xff]
        %v383 = vld [vmem:[%s240 + $0x2c8] sm:$0xff]
        %v384 = vld [vmem:[%s240 + $0x2d0] sm:$0xff]
        %v385 = vld [vmem:[%s240 + $0x2d8] sm:$0xff]
        %v386 = vld [vmem:[%s240 + $0x2e0] sm:$0xff]
        %v387 = vld [vmem:[%s240 + $0x2e8] sm:$0xff]
        %v388 = vld [vmem:[%s240 + $0x2f0] sm:$0xff]
        %v389 = vld [vmem:[%s240 + $0x2f8] sm:$0xff]
        %v390 = vld [vmem:[%s240 + $0x300] sm:$0xff]
        %v391 = vld [vmem:[%s240 + $0x308] sm:$0xff]
        %v392 = vld [vmem:[%s240 + $0x310] sm:$0xff]
        %v393 = vld [vmem:[%s240 + $0x318] sm:$0xff]
        %v394 = vld [vmem:[%s240 + $0x320] sm:$0xff]
        %v395 = vld [vmem:[%s240 + $0x328] sm:$0xff]
        %v396 = vld [vmem:[%s240 + $0x330] sm:$0xff]
        %v397 = vld [vmem:[%s240 + $0x338] sm:$0xff]
        %v398 = vld [vmem:[%s240 + $0x340] sm:$0xff]
        %v399 = vld [vmem:[%s240 + $0x348] sm:$0xff]
        %v400 = vld [vmem:[%s240 + $0x350] sm:$0xff]
        %v401 = vld [vmem:[%s240 + $0x358] sm:$0xff]
        %v402 = vld [vmem:[%s240 + $0x360] sm:$0xff]
        %v403 = vld [vmem:[%s240 + $0x368] sm:$0xff]
        %v404 = vld [vmem:[%s240 + $0x370] sm:$0xff]
        %v405 = vld [vmem:[%s240 + $0x378] sm:$0xff]
        %v406 = vld [vmem:[%s240 + $0x380] sm:$0xff]
        %v407 = vld [vmem:[%s240 + $0x388] sm:$0xff]
        %v408 = vld [vmem:[%s240 + $0x390] sm:$0xff]
        %v409 = vld [vmem:[%s240 + $0x398] sm:$0xff]
        %v410 = vld [vmem:[%s240 + $0x3a0] sm:$0xff]
        %v411 = vld [vmem:[%s240 + $0x3a8] sm:$0xff]
        %v412 = vld [vmem:[%s240 + $0x3b0] sm:$0xff]
        %v413 = vld [vmem:[%s240 + $0x3b8] sm:$0xff]
        %v414 = vld [vmem:[%s240 + $0x3c0] sm:$0xff]
        %v415 = vld [vmem:[%s240 + $0x3c8] sm:$0xff]
        %v416 = vld [vmem:[%s240 + $0x3d0] sm:$0xff]
        %v417 = vld [vmem:[%s240 + $0x3d8] sm:$0xff]
        %v418 = vld [vmem:[%s240 + $0x3e0] sm:$0xff]
        %v419 = vld [vmem:[%s240 + $0x3e8] sm:$0xff]
        %v420 = vld [vmem:[%s240 + $0x3f0] sm:$0xff]
        %v421 = vld [vmem:[%s240 + $0x3f8] sm:$0xff]
        %v422 = vld [vmem:[%s240 + $0x400] sm:$0xff]
        %v423 = vld [vmem:[%s240 + $0x408] sm:$0xff]
        %v424 = vld [vmem:[%s240 + $0x410] sm:$0xff]
        %v425 = vld [vmem:[%s240 + $0x418] sm:$0xff]
        %v426 = vld [vmem:[%s240 + $0x420] sm:$0xff]
        %v427 = vld [vmem:[%s240 + $0x428] sm:$0xff]
        %v428 = vld [vmem:[%s240 + $0x430] sm:$0xff]
        %v429 = vld [vmem:[%s240 + $0x438] sm:$0xff]
        %v430 = vld [vmem:[%s240 + $0x440] sm:$0xff]
        %v431 = vld [vmem:[%s240 + $0x448] sm:$0xff]
        %v432 = vld [vmem:[%s240 + $0x450] sm:$0xff]
        %v433 = vld [vmem:[%s240 + $0x458] sm:$0xff]
        %v434 = vld [vmem:[%s240 + $0x460] sm:$0xff]
        %v435 = vld [vmem:[%s240 + $0x468] sm:$0xff]
        %v436 = vld [vmem:[%s240 + $0x470] sm:$0xff]
        %v437 = vld [vmem:[%s240 + $0x478] sm:$0xff]
        %v438 = vld [vmem:[%s250] sm:$0xff]
        %v439 = vld [vmem:[%s250 + $0x8] sm:$0xff]
        %v440 = vld [vmem:[%s250 + $0x10] sm:$0xff]
        %v441 = vld [vmem:[%s250 + $0x18] sm:$0xff]
        %v442 = vld [vmem:[%s250 + $0x20] sm:$0xff]
        %v443 = vld [vmem:[%s250 + $0x28] sm:$0xff]
        %v444 = vld [vmem:[%s250 + $0x30] sm:$0xff]
        %v445 = vld [vmem:[%s250 + $0x38] sm:$0xff]
        %v446 = vld [vmem:[%s250 + $0x40] sm:$0xff]
        %v447 = vld [vmem:[%s250 + $0x48] sm:$0xff]
        %v448 = vld [vmem:[%s250 + $0x50] sm:$0xff]
        %v449 = vld [vmem:[%s250 + $0x58] sm:$0xff]
        %v450 = vld [vmem:[%s250 + $0x60] sm:$0xff]
        %v451 = vld [vmem:[%s250 + $0x68] sm:$0xff]
        %v452 = vld [vmem:[%s250 + $0x70] sm:$0xff]
        %v453 = vld [vmem:[%s250 + $0x78] sm:$0xff]
        %v454 = vld [vmem:[%s250 + $0x80] sm:$0xff]
        %v455 = vld [vmem:[%s250 + $0x88] sm:$0xff]
        %v456 = vld [vmem:[%s250 + $0x90] sm:$0xff]
        %v457 = vld [vmem:[%s250 + $0x98] sm:$0xff]
        %v458 = vld [vmem:[%s250 + $0xa0] sm:$0xff]
        %v459 = vld [vmem:[%s250 + $0xa8] sm:$0xff]
        %v460 = vld [vmem:[%s250 + $0xb0] sm:$0xff]
        %v461 = vld [vmem:[%s250 + $0xb8] sm:$0xff]
        %v462 = vld [vmem:[%s250 + $0xc0] sm:$0xff]
        %v463 = vld [vmem:[%s250 + $0xc8] sm:$0xff]
        %v464 = vld [vmem:[%s250 + $0xd0] sm:$0xff]
        %v465 = vld [vmem:[%s250 + $0xd8] sm:$0xff]
        %v466 = vld [vmem:[%s250 + $0xe0] sm:$0xff]
        %v467 = vld [vmem:[%s250 + $0xe8] sm:$0xff]
        %v468 = vld [vmem:[%s250 + $0xf0] sm:$0xff]
        %v469 = vld [vmem:[%s250 + $0xf8] sm:$0xff]
        %v470 = vld [vmem:[%s250 + $0x100] sm:$0xff]
        %v471 = vld [vmem:[%s250 + $0x108] sm:$0xff]
        %v472 = vld [vmem:[%s250 + $0x110] sm:$0xff]
        %v473 = vld [vmem:[%s250 + $0x118] sm:$0xff]
        %v474 = vld [vmem:[%s250 + $0x120] sm:$0xff]
        %v475 = vld [vmem:[%s250 + $0x128] sm:$0xff]
        %v476 = vld [vmem:[%s250 + $0x130] sm:$0xff]
        %v477 = vld [vmem:[%s250 + $0x138] sm:$0xff]
        %v478 = vld [vmem:[%s250 + $0x140] sm:$0xff]
        %v479 = vld [vmem:[%s250 + $0x148] sm:$0xff]
        %v480 = vld [vmem:[%s250 + $0x150] sm:$0xff]
        %v481 = vld [vmem:[%s250 + $0x158] sm:$0xff]
        %v482 = vld [vmem:[%s250 + $0x160] sm:$0xff]
        %v483 = vld [vmem:[%s250 + $0x168] sm:$0xff]
        %v484 = vld [vmem:[%s250 + $0x170] sm:$0xff]
        %v485 = vld [vmem:[%s250 + $0x178] sm:$0xff]
        %v486 = vld [vmem:[%s250 + $0x180] sm:$0xff]
        %v487 = vld [vmem:[%s250 + $0x188] sm:$0xff]
        %v488 = vld [vmem:[%s250 + $0x190] sm:$0xff]
        %v489 = vld [vmem:[%s250 + $0x198] sm:$0xff]
        %v490 = vld [vmem:[%s250 + $0x1a0] sm:$0xff]
        %v491 = vld [vmem:[%s250 + $0x1a8] sm:$0xff]
        %v492 = vld [vmem:[%s250 + $0x1b0] sm:$0xff]
        %v493 = vld [vmem:[%s250 + $0x1b8] sm:$0xff]
        %v494 = vld [vmem:[%s250 + $0x1c0] sm:$0xff]
        %v495 = vld [vmem:[%s250 + $0x1c8] sm:$0xff]
        %v496 = vld [vmem:[%s250 + $0x1d0] sm:$0xff]
        %v497 = vld [vmem:[%s250 + $0x1d8] sm:$0xff]
        %v498 = vld [vmem:[%s250 + $0x1e0] sm:$0xff]
        %v499 = vld [vmem:[%s250 + $0x1e8] sm:$0xff]
        %v500 = vld [vmem:[%s250 + $0x1f0] sm:$0xff]
        %v501 = vld [vmem:[%s250 + $0x1f8] sm:$0xff]
        %v502 = vld [vmem:[%s250 + $0x200] sm:$0xff]
        %v503 = vld [vmem:[%s250 + $0x208] sm:$0xff]
        %v504 = vld [vmem:[%s250 + $0x210] sm:$0xff]
        %v505 = vld [vmem:[%s250 + $0x218] sm:$0xff]
        %v506 = vld [vmem:[%s250 + $0x220] sm:$0xff]
        %v507 = vld [vmem:[%s250 + $0x228] sm:$0xff]
        %v508 = vld [vmem:[%s250 + $0x230] sm:$0xff]
        %v509 = vld [vmem:[%s250 + $0x238] sm:$0xff]
        %v510 = vld [vmem:[%s250 + $0x240] sm:$0xff]
        %v511 = vld [vmem:[%s250 + $0x248] sm:$0xff]
        %v512 = vld [vmem:[%s250 + $0x250] sm:$0xff]
        %v513 = vld [vmem:[%s250 + $0x258] sm:$0xff]
        %v514 = vld [vmem:[%s250 + $0x260] sm:$0xff]
        %v515 = vld [vmem:[%s250 + $0x268] sm:$0xff]
        %v516 = vld [vmem:[%s250 + $0x270] sm:$0xff]
        %v517 = vld [vmem:[%s250 + $0x278] sm:$0xff]
        %v518 = vld [vmem:[%s250 + $0x280] sm:$0xff]
        %v519 = vld [vmem:[%s250 + $0x288] sm:$0xff]
        %v520 = vld [vmem:[%s250 + $0x290] sm:$0xff]
        %v521 = vld [vmem:[%s250 + $0x298] sm:$0xff]
        %v522 = vld [vmem:[%s250 + $0x2a0] sm:$0xff]
        %v523 = vld [vmem:[%s250 + $0x2a8] sm:$0xff]
        %v524 = vld [vmem:[%s250 + $0x2b0] sm:$0xff]
        %v525 = vld [vmem:[%s250 + $0x2b8] sm:$0xff]
        %v526 = vld [vmem:[%s250 + $0x2c0] sm:$0xff]
        %v527 = vld [vmem:[%s250 + $0x2c8] sm:$0xff]
        %v528 = vld [vmem:[%s250 + $0x2d0] sm:$0xff]
        %v529 = vld [vmem:[%s250 + $0x2d8] sm:$0xff]
        %v530 = vld [vmem:[%s250 + $0x2e0] sm:$0xff]
        %v531 = vld [vmem:[%s250 + $0x2e8] sm:$0xff]
        %v532 = vld [vmem:[%s250 + $0x2f0] sm:$0xff]
        %v533 = vld [vmem:[%s250 + $0x2f8] sm:$0xff]
        %v534 = vld [vmem:[%s250 + $0x300] sm:$0xff]
        %v535 = vld [vmem:[%s250 + $0x308] sm:$0xff]
        %v536 = vld [vmem:[%s250 + $0x310] sm:$0xff]
        %v537 = vld [vmem:[%s250 + $0x318] sm:$0xff]
        %v538 = vld [vmem:[%s250 + $0x320] sm:$0xff]
        %v539 = vld [vmem:[%s250 + $0x328] sm:$0xff]
        %v540 = vld [vmem:[%s250 + $0x330] sm:$0xff]
        %v541 = vld [vmem:[%s250 + $0x338] sm:$0xff]
        %v542 = vld [vmem:[%s250 + $0x340] sm:$0xff]
        %v543 = vld [vmem:[%s250 + $0x348] sm:$0xff]
        %v544 = vld [vmem:[%s250 + $0x350] sm:$0xff]
        %v545 = vld [vmem:[%s250 + $0x358] sm:$0xff]
        %v546 = vld [vmem:[%s250 + $0x360] sm:$0xff]
        %v547 = vld [vmem:[%s250 + $0x368] sm:$0xff]
        %v548 = vld [vmem:[%s250 + $0x370] sm:$0xff]
        %v549 = vld [vmem:[%s250 + $0x378] sm:$0xff]
        %v550 = vld [vmem:[%s250 + $0x380] sm:$0xff]
        %v551 = vld [vmem:[%s250 + $0x388] sm:$0xff]
        %v552 = vld [vmem:[%s250 + $0x390] sm:$0xff]
        %v553 = vld [vmem:[%s250 + $0x398] sm:$0xff]
        %v554 = vld [vmem:[%s250 + $0x3a0] sm:$0xff]
        %v555 = vld [vmem:[%s250 + $0x3a8] sm:$0xff]
        %v556 = vld [vmem:[%s250 + $0x3b0] sm:$0xff]
        %v557 = vld [vmem:[%s250 + $0x3b8] sm:$0xff]
        %v558 = vld [vmem:[%s250 + $0x3c0] sm:$0xff]
        %v559 = vld [vmem:[%s250 + $0x3c8] sm:$0xff]
        %v560 = vld [vmem:[%s250 + $0x3d0] sm:$0xff]
        %v561 = vld [vmem:[%s250 + $0x3d8] sm:$0xff]
        %v562 = vld [vmem:[%s250 + $0x3e0] sm:$0xff]
        %v563 = vld [vmem:[%s250 + $0x3e8] sm:$0xff]
        %v564 = vld [vmem:[%s250 + $0x3f0] sm:$0xff]
        %v565 = vld [vmem:[%s250 + $0x3f8] sm:$0xff]
        %v566 = vld [vmem:[%s250 + $0x400] sm:$0xff]
        %v567 = vld [vmem:[%s250 + $0x408] sm:$0xff]
        %v568 = vld [vmem:[%s250 + $0x410] sm:$0xff]
        %v569 = vld [vmem:[%s250 + $0x418] sm:$0xff]
        %v570 = vld [vmem:[%s250 + $0x420] sm:$0xff]
        %v571 = vld [vmem:[%s250 + $0x428] sm:$0xff]
        %v572 = vld [vmem:[%s250 + $0x430] sm:$0xff]
        %v573 = vld [vmem:[%s250 + $0x438] sm:$0xff]
        %v574 = vld [vmem:[%s250 + $0x440] sm:$0xff]
        %v575 = vld [vmem:[%s250 + $0x448] sm:$0xff]
        %v576 = vld [vmem:[%s250 + $0x450] sm:$0xff]
        %v577 = vld [vmem:[%s250 + $0x458] sm:$0xff]
        %v578 = vld [vmem:[%s250 + $0x460] sm:$0xff]
        %v579 = vld [vmem:[%s250 + $0x468] sm:$0xff]
        %v580 = vld [vmem:[%s250 + $0x470] sm:$0xff]
        %v581 = vld [vmem:[%s250 + $0x478] sm:$0xff]
        %v582 = vadd.f32 %v294, %v438
        %v583 = vadd.f32 %v295, %v439
        %v584 = vadd.f32 %v296, %v440
        %v585 = vadd.f32 %v297, %v441
        %v586 = vadd.f32 %v298, %v442
        %v587 = vadd.f32 %v299, %v443
        %v588 = vadd.f32 %v300, %v444
        %v589 = vadd.f32 %v301, %v445
        %v590 = vadd.f32 %v302, %v446
        %v591 = vadd.f32 %v303, %v447
        %v592 = vadd.f32 %v304, %v448
        %v593 = vadd.f32 %v305, %v449
        %v594 = vadd.f32 %v306, %v450
        %v595 = vadd.f32 %v307, %v451
        %v596 = vadd.f32 %v308, %v452
        %v597 = vadd.f32 %v309, %v453
        %v598 = vadd.f32 %v310, %v454
        %v599 = vadd.f32 %v311, %v455
        %v600 = vadd.f32 %v312, %v456
        %v601 = vadd.f32 %v313, %v457
        %v602 = vadd.f32 %v314, %v458
        %v603 = vadd.f32 %v315, %v459
        %v604 = vadd.f32 %v316, %v460
        %v605 = vadd.f32 %v317, %v461
        %v606 = vadd.f32 %v318, %v462
        %v607 = vadd.f32 %v319, %v463
        %v608 = vadd.f32 %v320, %v464
        %v609 = vadd.f32 %v321, %v465
        %v610 = vadd.f32 %v322, %v466
        %v611 = vadd.f32 %v323, %v467
        %v612 = vadd.f32 %v324, %v468
        %v613 = vadd.f32 %v325, %v469
        %v614 = vadd.f32 %v326, %v470
        %v615 = vadd.f32 %v327, %v471
        %v616 = vadd.f32 %v328, %v472
        %v617 = vadd.f32 %v329, %v473
        %v618 = vadd.f32 %v330, %v474
        %v619 = vadd.f32 %v331, %v475
        %v620 = vadd.f32 %v332, %v476
        %v621 = vadd.f32 %v333, %v477
        %v622 = vadd.f32 %v334, %v478
        %v623 = vadd.f32 %v335, %v479
        %v624 = vadd.f32 %v336, %v480
        %v625 = vadd.f32 %v337, %v481
        %v626 = vadd.f32 %v338, %v482
        %v627 = vadd.f32 %v339, %v483
        %v628 = vadd.f32 %v340, %v484
        %v629 = vadd.f32 %v341, %v485
        %v630 = vadd.f32 %v342, %v486
        %v631 = vadd.f32 %v343, %v487
        %v632 = vadd.f32 %v344, %v488
        %v633 = vadd.f32 %v345, %v489
        %v634 = vadd.f32 %v346, %v490
        %v635 = vadd.f32 %v347, %v491
        %v636 = vadd.f32 %v348, %v492
        %v637 = vadd.f32 %v349, %v493
        %v638 = vadd.f32 %v350, %v494
        %v639 = vadd.f32 %v351, %v495
        %v640 = vadd.f32 %v352, %v496
        %v641 = vadd.f32 %v353, %v497
        %v642 = vadd.f32 %v354, %v498
        %v643 = vadd.f32 %v355, %v499
        %v644 = vadd.f32 %v356, %v500
        %v645 = vadd.f32 %v357, %v501
        %v646 = vadd.f32 %v358, %v502
        %v647 = vadd.f32 %v359, %v503
        %v648 = vadd.f32 %v360, %v504
        %v649 = vadd.f32 %v361, %v505
        %v650 = vadd.f32 %v362, %v506
        %v651 = vadd.f32 %v363, %v507
        %v652 = vadd.f32 %v364, %v508
        %v653 = vadd.f32 %v365, %v509
        %v654 = vadd.f32 %v366, %v510
        %v655 = vadd.f32 %v367, %v511
        %v656 = vadd.f32 %v368, %v512
        %v657 = vadd.f32 %v369, %v513
        %v658 = vadd.f32 %v370, %v514
        %v659 = vadd.f32 %v371, %v515
        %v660 = vadd.f32 %v372, %v516
        %v661 = vadd.f32 %v373, %v517
        %v662 = vadd.f32 %v374, %v518
        %v663 = vadd.f32 %v375, %v519
        %v664 = vadd.f32 %v376, %v520
        %v665 = vadd.f32 %v377, %v521
        %v666 = vadd.f32 %v378, %v522
        %v667 = vadd.f32 %v379, %v523
        %v668 = vadd.f32 %v380, %v524
        %v669 = vadd.f32 %v381, %v525
        %v670 = vadd.f32 %v382, %v526
        %v671 = vadd.f32 %v383, %v527
        %v672 = vadd.f32 %v384, %v528
        %v673 = vadd.f32 %v385, %v529
        %v674 = vadd.f32 %v386, %v530
        %v675 = vadd.f32 %v387, %v531
        %v676 = vadd.f32 %v388, %v532
        %v677 = vadd.f32 %v389, %v533
        %v678 = vadd.f32 %v390, %v534
        %v679 = vadd.f32 %v391, %v535
        %v680 = vadd.f32 %v392, %v536
        %v681 = vadd.f32 %v393, %v537
        %v682 = vadd.f32 %v394, %v538
        %v683 = vadd.f32 %v395, %v539
        %v684 = vadd.f32 %v396, %v540
        %v685 = vadd.f32 %v397, %v541
        %v686 = vadd.f32 %v398, %v542
        %v687 = vadd.f32 %v399, %v543
        %v688 = vadd.f32 %v400, %v544
        %v689 = vadd.f32 %v401, %v545
        %v690 = vadd.f32 %v402, %v546
        %v691 = vadd.f32 %v403, %v547
        %v692 = vadd.f32 %v404, %v548
        %v693 = vadd.f32 %v405, %v549
        %v694 = vadd.f32 %v406, %v550
        %v695 = vadd.f32 %v407, %v551
        %v696 = vadd.f32 %v408, %v552
        %v697 = vadd.f32 %v409, %v553
        %v698 = vadd.f32 %v410, %v554
        %v699 = vadd.f32 %v411, %v555
        %v700 = vadd.f32 %v412, %v556
        %v701 = vadd.f32 %v413, %v557
        %v702 = vadd.f32 %v414, %v558
        %v703 = vadd.f32 %v415, %v559
        %v704 = vadd.f32 %v416, %v560
        %v705 = vadd.f32 %v417, %v561
        %v706 = vadd.f32 %v418, %v562
        %v707 = vadd.f32 %v419, %v563
        %v708 = vadd.f32 %v420, %v564
        %v709 = vadd.f32 %v421, %v565
        %v710 = vadd.f32 %v422, %v566
        %v711 = vadd.f32 %v423, %v567
        %v712 = vadd.f32 %v424, %v568
        %v713 = vadd.f32 %v425, %v569
        %v714 = vadd.f32 %v426, %v570
        %v715 = vadd.f32 %v427, %v571
        %v716 = vadd.f32 %v428, %v572
        %v717 = vadd.f32 %v429, %v573
        %v718 = vadd.f32 %v430, %v574
        %v719 = vadd.f32 %v431, %v575
        %v720 = vadd.f32 %v432, %v576
        %v721 = vadd.f32 %v433, %v577
        %v722 = vadd.f32 %v434, %v578
        %v723 = vadd.f32 %v435, %v579
        %v724 = vadd.f32 %v436, %v580
        %v725 = vadd.f32 %v437, %v581
        %v726 = vadd.f32 %v582, %v583
        %v727 = vadd.f32 %v726, %v584
        %v728 = vadd.f32 %v727, %v585
        %v729 = vadd.f32 %v728, %v586
        %v730 = vadd.f32 %v729, %v587
        %731 = vadd.xlane.f32.xlu0 %v730
        %v732 = vpop.xlane.xlu0 %731
        %v733 = vadd.f32 %v588, %v589
        %v734 = vadd.f32 %v733, %v590
        %v735 = vadd.f32 %v734, %v591
        %v736 = vadd.f32 %v735, %v592
        %v737 = vadd.f32 %v736, %v593
        %738 = vadd.xlane.f32.xlu0 %v737
        %v739 = vpop.xlane.xlu0 %738
        %v740 = vadd.f32 %v594, %v595
        %v741 = vadd.f32 %v740, %v596
        %v742 = vadd.f32 %v741, %v597
        %v743 = vadd.f32 %v742, %v598
        %v744 = vadd.f32 %v743, %v599
        %745 = vadd.xlane.f32.xlu0 %v744
        %v746 = vpop.xlane.xlu0 %745
        %v747 = vadd.f32 %v600, %v601
        %v748 = vadd.f32 %v747, %v602
        %v749 = vadd.f32 %v748, %v603
        %v750 = vadd.f32 %v749, %v604
        %v751 = vadd.f32 %v750, %v605
        %752 = vadd.xlane.f32.xlu0 %v751
        %v753 = vpop.xlane.xlu0 %752
        %v754 = vadd.f32 %v606, %v607
        %v755 = vadd.f32 %v754, %v608
        %v756 = vadd.f32 %v755, %v609
        %v757 = vadd.f32 %v756, %v610
        %v758 = vadd.f32 %v757, %v611
        %759 = vadd.xlane.f32.xlu0 %v758
        %v760 = vpop.xlane.xlu0 %759
        %v761 = vadd.f32 %v612, %v613
        %v762 = vadd.f32 %v761, %v614
        %v763 = vadd.f32 %v762, %v615
        %v764 = vadd.f32 %v763, %v616
        %v765 = vadd.f32 %v764, %v617
        %766 = vadd.xlane.f32.xlu0 %v765
        %v767 = vpop.xlane.xlu0 %766
        %v768 = vadd.f32 %v618, %v619
        %v769 = vadd.f32 %v768, %v620
        %v770 = vadd.f32 %v769, %v621
        %v771 = vadd.f32 %v770, %v622
        %v772 = vadd.f32 %v771, %v623
        %773 = vadd.xlane.f32.xlu0 %v772
        %v774 = vpop.xlane.xlu0 %773
        %v775 = vadd.f32 %v624, %v625
        %v776 = vadd.f32 %v775, %v626
        %v777 = vadd.f32 %v776, %v627
        %v778 = vadd.f32 %v777, %v628
        %v779 = vadd.f32 %v778, %v629
        %780 = vadd.xlane.f32.xlu0 %v779
        %v781 = vpop.xlane.xlu0 %780
        %v782 = vadd.f32 %v630, %v631
        %v783 = vadd.f32 %v782, %v632
        %v784 = vadd.f32 %v783, %v633
        %v785 = vadd.f32 %v784, %v634
        %v786 = vadd.f32 %v785, %v635
        %787 = vadd.xlane.f32.xlu0 %v786
        %v788 = vpop.xlane.xlu0 %787
        %v789 = vadd.f32 %v636, %v637
        %v790 = vadd.f32 %v789, %v638
        %v791 = vadd.f32 %v790, %v639
        %v792 = vadd.f32 %v791, %v640
        %v793 = vadd.f32 %v792, %v641
        %794 = vadd.xlane.f32.xlu0 %v793
        %v795 = vpop.xlane.xlu0 %794
        %v796 = vadd.f32 %v642, %v643
        %v797 = vadd.f32 %v796, %v644
        %v798 = vadd.f32 %v797, %v645
        %v799 = vadd.f32 %v798, %v646
        %v800 = vadd.f32 %v799, %v647
        %801 = vadd.xlane.f32.xlu0 %v800
        %v802 = vpop.xlane.xlu0 %801
        %v803 = vadd.f32 %v648, %v649
        %v804 = vadd.f32 %v803, %v650
        %v805 = vadd.f32 %v804, %v651
        %v806 = vadd.f32 %v805, %v652
        %v807 = vadd.f32 %v806, %v653
        %808 = vadd.xlane.f32.xlu0 %v807
        %v809 = vpop.xlane.xlu0 %808
        %v810 = vadd.f32 %v654, %v655
        %v811 = vadd.f32 %v810, %v656
        %v812 = vadd.f32 %v811, %v657
        %v813 = vadd.f32 %v812, %v658
        %v814 = vadd.f32 %v813, %v659
        %815 = vadd.xlane.f32.xlu0 %v814
        %v816 = vpop.xlane.xlu0 %815
        %v817 = vadd.f32 %v660, %v661
        %v818 = vadd.f32 %v817, %v662
        %v819 = vadd.f32 %v818, %v663
        %v820 = vadd.f32 %v819, %v664
        %v821 = vadd.f32 %v820, %v665
        %822 = vadd.xlane.f32.xlu0 %v821
        %v823 = vpop.xlane.xlu0 %822
        %v824 = vadd.f32 %v666, %v667
        %v825 = vadd.f32 %v824, %v668
        %v826 = vadd.f32 %v825, %v669
        %v827 = vadd.f32 %v826, %v670
        %v828 = vadd.f32 %v827, %v671
        %829 = vadd.xlane.f32.xlu0 %v828
        %v830 = vpop.xlane.xlu0 %829
        %v831 = vadd.f32 %v672, %v673
        %v832 = vadd.f32 %v831, %v674
        %v833 = vadd.f32 %v832, %v675
        %v834 = vadd.f32 %v833, %v676
        %v835 = vadd.f32 %v834, %v677
        %836 = vadd.xlane.f32.xlu0 %v835
        %v837 = vpop.xlane.xlu0 %836
        %v838 = vadd.f32 %v678, %v679
        %v839 = vadd.f32 %v838, %v680
        %v840 = vadd.f32 %v839, %v681
        %v841 = vadd.f32 %v840, %v682
        %v842 = vadd.f32 %v841, %v683
        %843 = vadd.xlane.f32.xlu0 %v842
        %v844 = vpop.xlane.xlu0 %843
        %v845 = vadd.f32 %v684, %v685
        %v846 = vadd.f32 %v845, %v686
        %v847 = vadd.f32 %v846, %v687
        %v848 = vadd.f32 %v847, %v688
        %v849 = vadd.f32 %v848, %v689
        %850 = vadd.xlane.f32.xlu0 %v849
        %v851 = vpop.xlane.xlu0 %850
        %v852 = vadd.f32 %v690, %v691
        %v853 = vadd.f32 %v852, %v692
        %v854 = vadd.f32 %v853, %v693
        %v855 = vadd.f32 %v854, %v694
        %v856 = vadd.f32 %v855, %v695
        %857 = vadd.xlane.f32.xlu0 %v856
        %v858 = vpop.xlane.xlu0 %857
        %v859 = vadd.f32 %v696, %v697
        %v860 = vadd.f32 %v859, %v698
        %v861 = vadd.f32 %v860, %v699
        %v862 = vadd.f32 %v861, %v700
        %v863 = vadd.f32 %v862, %v701
        %864 = vadd.xlane.f32.xlu0 %v863
        %v865 = vpop.xlane.xlu0 %864
        %v866 = vadd.f32 %v702, %v703
        %v867 = vadd.f32 %v866, %v704
        %v868 = vadd.f32 %v867, %v705
        %v869 = vadd.f32 %v868, %v706
        %v870 = vadd.f32 %v869, %v707
        %871 = vadd.xlane.f32.xlu0 %v870
        %v872 = vpop.xlane.xlu0 %871
        %v873 = vadd.f32 %v708, %v709
        %v874 = vadd.f32 %v873, %v710
        %v875 = vadd.f32 %v874, %v711
        %v876 = vadd.f32 %v875, %v712
        %v877 = vadd.f32 %v876, %v713
        %878 = vadd.xlane.f32.xlu0 %v877
        %v879 = vpop.xlane.xlu0 %878
        %v880 = vadd.f32 %v714, %v715
        %v881 = vadd.f32 %v880, %v716
        %v882 = vadd.f32 %v881, %v717
        %v883 = vadd.f32 %v882, %v718
        %v884 = vadd.f32 %v883, %v719
        %885 = vadd.xlane.f32.xlu0 %v884
        %v886 = vpop.xlane.xlu0 %885
        %v887 = vadd.f32 %v720, %v721
        %v888 = vadd.f32 %v887, %v722
        %v889 = vadd.f32 %v888, %v723
        %v890 = vadd.f32 %v889, %v724
        %v891 = vadd.f32 %v890, %v725
        %892 = vadd.xlane.f32.xlu0 %v891
        %v893 = vpop.xlane.xlu0 %892
        %v894 = vrcp.pop 768.0
        %v895 = vmul.f32 768.0, %v894
        %v896 = vsub.f32 1.0, %v895
        %v897 = vmul.f32 %v894, %v896
        %v898 = vadd.f32 %v894, %v897
        %vm899 = vweird.f32 %v894
        %v900 = vsel %vm899, %v894, %v898
        %v901 = vmul.f32 %v732, %v900
        %v902 = vmul.f32 %v739, %v900
        %v903 = vmul.f32 %v746, %v900
        %v904 = vmul.f32 %v753, %v900
        %v905 = vmul.f32 %v760, %v900
        %v906 = vmul.f32 %v767, %v900
        %v907 = vmul.f32 %v774, %v900
        %v908 = vmul.f32 %v781, %v900
        %v909 = vmul.f32 %v788, %v900
        %v910 = vmul.f32 %v795, %v900
        %v911 = vmul.f32 %v802, %v900
        %v912 = vmul.f32 %v809, %v900
        %v913 = vmul.f32 %v816, %v900
        %v914 = vmul.f32 %v823, %v900
        %v915 = vmul.f32 %v830, %v900
        %v916 = vmul.f32 %v837, %v900
        %v917 = vmul.f32 %v844, %v900
        %v918 = vmul.f32 %v851, %v900
        %v919 = vmul.f32 %v858, %v900
        %v920 = vmul.f32 %v865, %v900
        %v921 = vmul.f32 %v872, %v900
        %v922 = vmul.f32 %v879, %v900
        %v923 = vmul.f32 %v886, %v900
        %v924 = vmul.f32 %v893, %v900
        %v925 = vsub.f32 %v582, %v901
        %v926 = vsub.f32 %v583, %v901
        %v927 = vsub.f32 %v584, %v901
        %v928 = vsub.f32 %v585, %v901
        %v929 = vsub.f32 %v586, %v901
        %v930 = vsub.f32 %v587, %v901
        %v931 = vsub.f32 %v588, %v902
        %v932 = vsub.f32 %v589, %v902
        %v933 = vsub.f32 %v590, %v902
        %v934 = vsub.f32 %v591, %v902
        %v935 = vsub.f32 %v592, %v902
        %v936 = vsub.f32 %v593, %v902
        %v937 = vsub.f32 %v594, %v903
        %v938 = vsub.f32 %v595, %v903
        %v939 = vsub.f32 %v596, %v903
        %v940 = vsub.f32 %v597, %v903
        %v941 = vsub.f32 %v598, %v903
        %v942 = vsub.f32 %v599, %v903
        %v943 = vsub.f32 %v600, %v904
        %v944 = vsub.f32 %v601, %v904
        %v945 = vsub.f32 %v602, %v904
        %v946 = vsub.f32 %v603, %v904
        %v947 = vsub.f32 %v604, %v904
        %v948 = vsub.f32 %v605, %v904
        %v949 = vsub.f32 %v606, %v905
        %v950 = vsub.f32 %v607, %v905
        %v951 = vsub.f32 %v608, %v905
        %v952 = vsub.f32 %v609, %v905
        %v953 = vsub.f32 %v610, %v905
        %v954 = vsub.f32 %v611, %v905
        %v955 = vsub.f32 %v612, %v906
        %v956 = vsub.f32 %v613, %v906
        %v957 = vsub.f32 %v614, %v906
        %v958 = vsub.f32 %v615, %v906
        %v959 = vsub.f32 %v616, %v906
        %v960 = vsub.f32 %v617, %v906
        %v961 = vsub.f32 %v618, %v907
        %v962 = vsub.f32 %v619, %v907
        %v963 = vsub.f32 %v620, %v907
        %v964 = vsub.f32 %v621, %v907
        %v965 = vsub.f32 %v622, %v907
        %v966 = vsub.f32 %v623, %v907
        %v967 = vsub.f32 %v624, %v908
        %v968 = vsub.f32 %v625, %v908
        %v969 = vsub.f32 %v626, %v908
        %v970 = vsub.f32 %v627, %v908
        %v971 = vsub.f32 %v628, %v908
        %v972 = vsub.f32 %v629, %v908
        %v973 = vsub.f32 %v630, %v909
        %v974 = vsub.f32 %v631, %v909
        %v975 = vsub.f32 %v632, %v909
        %v976 = vsub.f32 %v633, %v909
        %v977 = vsub.f32 %v634, %v909
        %v978 = vsub.f32 %v635, %v909
        %v979 = vsub.f32 %v636, %v910
        %v980 = vsub.f32 %v637, %v910
        %v981 = vsub.f32 %v638, %v910
        %v982 = vsub.f32 %v639, %v910
        %v983 = vsub.f32 %v640, %v910
        %v984 = vsub.f32 %v641, %v910
        %v985 = vsub.f32 %v642, %v911
        %v986 = vsub.f32 %v643, %v911
        %v987 = vsub.f32 %v644, %v911
        %v988 = vsub.f32 %v645, %v911
        %v989 = vsub.f32 %v646, %v911
        %v990 = vsub.f32 %v647, %v911
        %v991 = vsub.f32 %v648, %v912
        %v992 = vsub.f32 %v649, %v912
        %v993 = vsub.f32 %v650, %v912
        %v994 = vsub.f32 %v651, %v912
        %v995 = vsub.f32 %v652, %v912
        %v996 = vsub.f32 %v653, %v912
        %v997 = vsub.f32 %v654, %v913
        %v998 = vsub.f32 %v655, %v913
        %v999 = vsub.f32 %v656, %v913
        %v1000 = vsub.f32 %v657, %v913
        %v1001 = vsub.f32 %v658, %v913
        %v1002 = vsub.f32 %v659, %v913
        %v1003 = vsub.f32 %v660, %v914
        %v1004 = vsub.f32 %v661, %v914
        %v1005 = vsub.f32 %v662, %v914
        %v1006 = vsub.f32 %v663, %v914
        %v1007 = vsub.f32 %v664, %v914
        %v1008 = vsub.f32 %v665, %v914
        %v1009 = vsub.f32 %v666, %v915
        %v1010 = vsub.f32 %v667, %v915
        %v1011 = vsub.f32 %v668, %v915
        %v1012 = vsub.f32 %v669, %v915
        %v1013 = vsub.f32 %v670, %v915
        %v1014 = vsub.f32 %v671, %v915
        %v1015 = vsub.f32 %v672, %v916
        %v1016 = vsub.f32 %v673, %v916
        %v1017 = vsub.f32 %v674, %v916
        %v1018 = vsub.f32 %v675, %v916
        %v1019 = vsub.f32 %v676, %v916
        %v1020 = vsub.f32 %v677, %v916
        %v1021 = vsub.f32 %v678, %v917
        %v1022 = vsub.f32 %v679, %v917
        %v1023 = vsub.f32 %v680, %v917
        %v1024 = vsub.f32 %v681, %v917
        %v1025 = vsub.f32 %v682, %v917
        %v1026 = vsub.f32 %v683, %v917
        %v1027 = vsub.f32 %v684, %v918
        %v1028 = vsub.f32 %v685, %v918
        %v1029 = vsub.f32 %v686, %v918
        %v1030 = vsub.f32 %v687, %v918
        %v1031 = vsub.f32 %v688, %v918
        %v1032 = vsub.f32 %v689, %v918
        %v1033 = vsub.f32 %v690, %v919
        %v1034 = vsub.f32 %v691, %v919
        %v1035 = vsub.f32 %v692, %v919
        %v1036 = vsub.f32 %v693, %v919
        %v1037 = vsub.f32 %v694, %v919
        %v1038 = vsub.f32 %v695, %v919
        %v1039 = vsub.f32 %v696, %v920
        %v1040 = vsub.f32 %v697, %v920
        %v1041 = vsub.f32 %v698, %v920
        %v1042 = vsub.f32 %v699, %v920
        %v1043 = vsub.f32 %v700, %v920
        %v1044 = vsub.f32 %v701, %v920
        %v1045 = vsub.f32 %v702, %v921
        %v1046 = vsub.f32 %v703, %v921
        %v1047 = vsub.f32 %v704, %v921
        %v1048 = vsub.f32 %v705, %v921
        %v1049 = vsub.f32 %v706, %v921
        %v1050 = vsub.f32 %v707, %v921
        %v1051 = vsub.f32 %v708, %v922
        %v1052 = vsub.f32 %v709, %v922
        %v1053 = vsub.f32 %v710, %v922
        %v1054 = vsub.f32 %v711, %v922
        %v1055 = vsub.f32 %v712, %v922
        %v1056 = vsub.f32 %v713, %v922
        %v1057 = vsub.f32 %v714, %v923
        %v1058 = vsub.f32 %v715, %v923
        %v1059 = vsub.f32 %v716, %v923
        %v1060 = vsub.f32 %v717, %v923
        %v1061 = vsub.f32 %v718, %v923
        %v1062 = vsub.f32 %v719, %v923
        %v1063 = vsub.f32 %v720, %v924
        %v1064 = vsub.f32 %v721, %v924
        %v1065 = vsub.f32 %v722, %v924
        %v1066 = vsub.f32 %v723, %v924
        %v1067 = vsub.f32 %v724, %v924
        %v1068 = vsub.f32 %v725, %v924
        %v1069 = vmul.f32 %v925, %v925
        %v1070 = vmul.f32 %v926, %v926
        %v1071 = vmul.f32 %v927, %v927
        %v1072 = vmul.f32 %v928, %v928
        %v1073 = vmul.f32 %v929, %v929
        %v1074 = vmul.f32 %v930, %v930
        %v1075 = vmul.f32 %v931, %v931
        %v1076 = vmul.f32 %v932, %v932
        %v1077 = vmul.f32 %v933, %v933
        %v1078 = vmul.f32 %v934, %v934
        %v1079 = vmul.f32 %v935, %v935
        %v1080 = vmul.f32 %v936, %v936
        %v1081 = vmul.f32 %v937, %v937
        %v1082 = vmul.f32 %v938, %v938
        %v1083 = vmul.f32 %v939, %v939
        %v1084 = vmul.f32 %v940, %v940
        %v1085 = vmul.f32 %v941, %v941
        %v1086 = vmul.f32 %v942, %v942
        %v1087 = vmul.f32 %v943, %v943
        %v1088 = vmul.f32 %v944, %v944
        %v1089 = vmul.f32 %v945, %v945
        %v1090 = vmul.f32 %v946, %v946
        %v1091 = vmul.f32 %v947, %v947
        %v1092 = vmul.f32 %v948, %v948
        %v1093 = vmul.f32 %v949, %v949
        %v1094 = vmul.f32 %v950, %v950
        %v1095 = vmul.f32 %v951, %v951
        %v1096 = vmul.f32 %v952, %v952
        %v1097 = vmul.f32 %v953, %v953
        %v1098 = vmul.f32 %v954, %v954
        %v1099 = vmul.f32 %v955, %v955
        %v1100 = vmul.f32 %v956, %v956
        %v1101 = vmul.f32 %v957, %v957
        %v1102 = vmul.f32 %v958, %v958
        %v1103 = vmul.f32 %v959, %v959
        %v1104 = vmul.f32 %v960, %v960
        %v1105 = vmul.f32 %v961, %v961
        %v1106 = vmul.f32 %v962, %v962
        %v1107 = vmul.f32 %v963, %v963
        %v1108 = vmul.f32 %v964, %v964
        %v1109 = vmul.f32 %v965, %v965
        %v1110 = vmul.f32 %v966, %v966
        %v1111 = vmul.f32 %v967, %v967
        %v1112 = vmul.f32 %v968, %v968
        %v1113 = vmul.f32 %v969, %v969
        %v1114 = vmul.f32 %v970, %v970
        %v1115 = vmul.f32 %v971, %v971
        %v1116 = vmul.f32 %v972, %v972
        %v1117 = vmul.f32 %v973, %v973
        %v1118 = vmul.f32 %v974, %v974
        %v1119 = vmul.f32 %v975, %v975
        %v1120 = vmul.f32 %v976, %v976
        %v1121 = vmul.f32 %v977, %v977
        %v1122 = vmul.f32 %v978, %v978
        %v1123 = vmul.f32 %v979, %v979
        %v1124 = vmul.f32 %v980, %v980
        %v1125 = vmul.f32 %v981, %v981
        %v1126 = vmul.f32 %v982, %v982
        %v1127 = vmul.f32 %v983, %v983
        %v1128 = vmul.f32 %v984, %v984
        %v1129 = vmul.f32 %v985, %v985
        %v1130 = vmul.f32 %v986, %v986
        %v1131 = vmul.f32 %v987, %v987
        %v1132 = vmul.f32 %v988, %v988
        %v1133 = vmul.f32 %v989, %v989
        %v1134 = vmul.f32 %v990, %v990
        %v1135 = vmul.f32 %v991, %v991
        %v1136 = vmul.f32 %v992, %v992
        %v1137 = vmul.f32 %v993, %v993
        %v1138 = vmul.f32 %v994, %v994
        %v1139 = vmul.f32 %v995, %v995
        %v1140 = vmul.f32 %v996, %v996
        %v1141 = vmul.f32 %v997, %v997
        %v1142 = vmul.f32 %v998, %v998
        %v1143 = vmul.f32 %v999, %v999
        %v1144 = vmul.f32 %v1000, %v1000
        %v1145 = vmul.f32 %v1001, %v1001
        %v1146 = vmul.f32 %v1002, %v1002
        %v1147 = vmul.f32 %v1003, %v1003
        %v1148 = vmul.f32 %v1004, %v1004
        %v1149 = vmul.f32 %v1005, %v1005
        %v1150 = vmul.f32 %v1006, %v1006
        %v1151 = vmul.f32 %v1007, %v1007
        %v1152 = vmul.f32 %v1008, %v1008
        %v1153 = vmul.f32 %v1009, %v1009
        %v1154 = vmul.f32 %v1010, %v1010
        %v1155 = vmul.f32 %v1011, %v1011
        %v1156 = vmul.f32 %v1012, %v1012
        %v1157 = vmul.f32 %v1013, %v1013
        %v1158 = vmul.f32 %v1014, %v1014
        %v1159 = vmul.f32 %v1015, %v1015
        %v1160 = vmul.f32 %v1016, %v1016
        %v1161 = vmul.f32 %v1017, %v1017
        %v1162 = vmul.f32 %v1018, %v1018
        %v1163 = vmul.f32 %v1019, %v1019
        %v1164 = vmul.f32 %v1020, %v1020
        %v1165 = vmul.f32 %v1021, %v1021
        %v1166 = vmul.f32 %v1022, %v1022
        %v1167 = vmul.f32 %v1023, %v1023
        %v1168 = vmul.f32 %v1024, %v1024
        %v1169 = vmul.f32 %v1025, %v1025
        %v1170 = vmul.f32 %v1026, %v1026
        %v1171 = vmul.f32 %v1027, %v1027
        %v1172 = vmul.f32 %v1028, %v1028
        %v1173 = vmul.f32 %v1029, %v1029
        %v1174 = vmul.f32 %v1030, %v1030
        %v1175 = vmul.f32 %v1031, %v1031
        %v1176 = vmul.f32 %v1032, %v1032
        %v1177 = vmul.f32 %v1033, %v1033
        %v1178 = vmul.f32 %v1034, %v1034
        %v1179 = vmul.f32 %v1035, %v1035
        %v1180 = vmul.f32 %v1036, %v1036
        %v1181 = vmul.f32 %v1037, %v1037
        %v1182 = vmul.f32 %v1038, %v1038
        %v1183 = vmul.f32 %v1039, %v1039
        %v1184 = vmul.f32 %v1040, %v1040
        %v1185 = vmul.f32 %v1041, %v1041
        %v1186 = vmul.f32 %v1042, %v1042
        %v1187 = vmul.f32 %v1043, %v1043
        %v1188 = vmul.f32 %v1044, %v1044
        %v1189 = vmul.f32 %v1045, %v1045
        %v1190 = vmul.f32 %v1046, %v1046
        %v1191 = vmul.f32 %v1047, %v1047
        %v1192 = vmul.f32 %v1048, %v1048
        %v1193 = vmul.f32 %v1049, %v1049
        %v1194 = vmul.f32 %v1050, %v1050
        %v1195 = vmul.f32 %v1051, %v1051
        %v1196 = vmul.f32 %v1052, %v1052
        %v1197 = vmul.f32 %v1053, %v1053
        %v1198 = vmul.f32 %v1054, %v1054
        %v1199 = vmul.f32 %v1055, %v1055
        %v1200 = vmul.f32 %v1056, %v1056
        %v1201 = vmul.f32 %v1057, %v1057
        %v1202 = vmul.f32 %v1058, %v1058
        %v1203 = vmul.f32 %v1059, %v1059
        %v1204 = vmul.f32 %v1060, %v1060
        %v1205 = vmul.f32 %v1061, %v1061
        %v1206 = vmul.f32 %v1062, %v1062
        %v1207 = vmul.f32 %v1063, %v1063
        %v1208 = vmul.f32 %v1064, %v1064
        %v1209 = vmul.f32 %v1065, %v1065
        %v1210 = vmul.f32 %v1066, %v1066
        %v1211 = vmul.f32 %v1067, %v1067
        %v1212 = vmul.f32 %v1068, %v1068
        %v1213 = vadd.f32 %v1069, %v1070
        %v1214 = vadd.f32 %v1213, %v1071
        %v1215 = vadd.f32 %v1214, %v1072
        %v1216 = vadd.f32 %v1215, %v1073
        %v1217 = vadd.f32 %v1216, %v1074
        %1218 = vadd.xlane.f32.xlu0 %v1217
        %v1219 = vpop.xlane.xlu0 %1218
        %v1220 = vadd.f32 %v1075, %v1076
        %v1221 = vadd.f32 %v1220, %v1077
        %v1222 = vadd.f32 %v1221, %v1078
        %v1223 = vadd.f32 %v1222, %v1079
        %v1224 = vadd.f32 %v1223, %v1080
        %1225 = vadd.xlane.f32.xlu0 %v1224
        %v1226 = vpop.xlane.xlu0 %1225
        %v1227 = vadd.f32 %v1081, %v1082
        %v1228 = vadd.f32 %v1227, %v1083
        %v1229 = vadd.f32 %v1228, %v1084
        %v1230 = vadd.f32 %v1229, %v1085
        %v1231 = vadd.f32 %v1230, %v1086
        %1232 = vadd.xlane.f32.xlu0 %v1231
        %v1233 = vpop.xlane.xlu0 %1232
        %v1234 = vadd.f32 %v1087, %v1088
        %v1235 = vadd.f32 %v1234, %v1089
        %v1236 = vadd.f32 %v1235, %v1090
        %v1237 = vadd.f32 %v1236, %v1091
        %v1238 = vadd.f32 %v1237, %v1092
        %1239 = vadd.xlane.f32.xlu0 %v1238
        %v1240 = vpop.xlane.xlu0 %1239
        %v1241 = vadd.f32 %v1093, %v1094
        %v1242 = vadd.f32 %v1241, %v1095
        %v1243 = vadd.f32 %v1242, %v1096
        %v1244 = vadd.f32 %v1243, %v1097
        %v1245 = vadd.f32 %v1244, %v1098
        %1246 = vadd.xlane.f32.xlu0 %v1245
        %v1247 = vpop.xlane.xlu0 %1246
        %v1248 = vadd.f32 %v1099, %v1100
        %v1249 = vadd.f32 %v1248, %v1101
        %v1250 = vadd.f32 %v1249, %v1102
        %v1251 = vadd.f32 %v1250, %v1103
        %v1252 = vadd.f32 %v1251, %v1104
        %1253 = vadd.xlane.f32.xlu0 %v1252
        %v1254 = vpop.xlane.xlu0 %1253
        %v1255 = vadd.f32 %v1105, %v1106
        %v1256 = vadd.f32 %v1255, %v1107
        %v1257 = vadd.f32 %v1256, %v1108
        %v1258 = vadd.f32 %v1257, %v1109
        %v1259 = vadd.f32 %v1258, %v1110
        %1260 = vadd.xlane.f32.xlu0 %v1259
        %v1261 = vpop.xlane.xlu0 %1260
        %v1262 = vadd.f32 %v1111, %v1112
        %v1263 = vadd.f32 %v1262, %v1113
        %v1264 = vadd.f32 %v1263, %v1114
        %v1265 = vadd.f32 %v1264, %v1115
        %v1266 = vadd.f32 %v1265, %v1116
        %1267 = vadd.xlane.f32.xlu0 %v1266
        %v1268 = vpop.xlane.xlu0 %1267
        %v1269 = vadd.f32 %v1117, %v1118
        %v1270 = vadd.f32 %v1269, %v1119
        %v1271 = vadd.f32 %v1270, %v1120
        %v1272 = vadd.f32 %v1271, %v1121
        %v1273 = vadd.f32 %v1272, %v1122
        %1274 = vadd.xlane.f32.xlu0 %v1273
        %v1275 = vpop.xlane.xlu0 %1274
        %v1276 = vadd.f32 %v1123, %v1124
        %v1277 = vadd.f32 %v1276, %v1125
        %v1278 = vadd.f32 %v1277, %v1126
        %v1279 = vadd.f32 %v1278, %v1127
        %v1280 = vadd.f32 %v1279, %v1128
        %1281 = vadd.xlane.f32.xlu0 %v1280
        %v1282 = vpop.xlane.xlu0 %1281
        %v1283 = vadd.f32 %v1129, %v1130
        %v1284 = vadd.f32 %v1283, %v1131
        %v1285 = vadd.f32 %v1284, %v1132
        %v1286 = vadd.f32 %v1285, %v1133
        %v1287 = vadd.f32 %v1286, %v1134
        %1288 = vadd.xlane.f32.xlu0 %v1287
        %v1289 = vpop.xlane.xlu0 %1288
        %v1290 = vadd.f32 %v1135, %v1136
        %v1291 = vadd.f32 %v1290, %v1137
        %v1292 = vadd.f32 %v1291, %v1138
        %v1293 = vadd.f32 %v1292, %v1139
        %v1294 = vadd.f32 %v1293, %v1140
        %1295 = vadd.xlane.f32.xlu0 %v1294
        %v1296 = vpop.xlane.xlu0 %1295
        %v1297 = vadd.f32 %v1141, %v1142
        %v1298 = vadd.f32 %v1297, %v1143
        %v1299 = vadd.f32 %v1298, %v1144
        %v1300 = vadd.f32 %v1299, %v1145
        %v1301 = vadd.f32 %v1300, %v1146
        %1302 = vadd.xlane.f32.xlu0 %v1301
        %v1303 = vpop.xlane.xlu0 %1302
        %v1304 = vadd.f32 %v1147, %v1148
        %v1305 = vadd.f32 %v1304, %v1149
        %v1306 = vadd.f32 %v1305, %v1150
        %v1307 = vadd.f32 %v1306, %v1151
        %v1308 = vadd.f32 %v1307, %v1152
        %1309 = vadd.xlane.f32.xlu0 %v1308
        %v1310 = vpop.xlane.xlu0 %1309
        %v1311 = vadd.f32 %v1153, %v1154
        %v1312 = vadd.f32 %v1311, %v1155
        %v1313 = vadd.f32 %v1312, %v1156
        %v1314 = vadd.f32 %v1313, %v1157
        %v1315 = vadd.f32 %v1314, %v1158
        %1316 = vadd.xlane.f32.xlu0 %v1315
        %v1317 = vpop.xlane.xlu0 %1316
        %v1318 = vadd.f32 %v1159, %v1160
        %v1319 = vadd.f32 %v1318, %v1161
        %v1320 = vadd.f32 %v1319, %v1162
        %v1321 = vadd.f32 %v1320, %v1163
        %v1322 = vadd.f32 %v1321, %v1164
        %1323 = vadd.xlane.f32.xlu0 %v1322
        %v1324 = vpop.xlane.xlu0 %1323
        %v1325 = vadd.f32 %v1165, %v1166
        %v1326 = vadd.f32 %v1325, %v1167
        %v1327 = vadd.f32 %v1326, %v1168
        %v1328 = vadd.f32 %v1327, %v1169
        %v1329 = vadd.f32 %v1328, %v1170
        %1330 = vadd.xlane.f32.xlu0 %v1329
        %v1331 = vpop.xlane.xlu0 %1330
        %v1332 = vadd.f32 %v1171, %v1172
        %v1333 = vadd.f32 %v1332, %v1173
        %v1334 = vadd.f32 %v1333, %v1174
        %v1335 = vadd.f32 %v1334, %v1175
        %v1336 = vadd.f32 %v1335, %v1176
        %1337 = vadd.xlane.f32.xlu0 %v1336
        %v1338 = vpop.xlane.xlu0 %1337
        %v1339 = vadd.f32 %v1177, %v1178
        %v1340 = vadd.f32 %v1339, %v1179
        %v1341 = vadd.f32 %v1340, %v1180
        %v1342 = vadd.f32 %v1341, %v1181
        %v1343 = vadd.f32 %v1342, %v1182
        %1344 = vadd.xlane.f32.xlu0 %v1343
        %v1345 = vpop.xlane.xlu0 %1344
        %v1346 = vadd.f32 %v1183, %v1184
        %v1347 = vadd.f32 %v1346, %v1185
        %v1348 = vadd.f32 %v1347, %v1186
        %v1349 = vadd.f32 %v1348, %v1187
        %v1350 = vadd.f32 %v1349, %v1188
        %1351 = vadd.xlane.f32.xlu0 %v1350
        %v1352 = vpop.xlane.xlu0 %1351
        %v1353 = vadd.f32 %v1189, %v1190
        %v1354 = vadd.f32 %v1353, %v1191
        %v1355 = vadd.f32 %v1354, %v1192
        %v1356 = vadd.f32 %v1355, %v1193
        %v1357 = vadd.f32 %v1356, %v1194
        %1358 = vadd.xlane.f32.xlu0 %v1357
        %v1359 = vpop.xlane.xlu0 %1358
        %v1360 = vadd.f32 %v1195, %v1196
        %v1361 = vadd.f32 %v1360, %v1197
        %v1362 = vadd.f32 %v1361, %v1198
        %v1363 = vadd.f32 %v1362, %v1199
        %v1364 = vadd.f32 %v1363, %v1200
        %1365 = vadd.xlane.f32.xlu0 %v1364
        %v1366 = vpop.xlane.xlu0 %1365
        %v1367 = vadd.f32 %v1201, %v1202
        %v1368 = vadd.f32 %v1367, %v1203
        %v1369 = vadd.f32 %v1368, %v1204
        %v1370 = vadd.f32 %v1369, %v1205
        %v1371 = vadd.f32 %v1370, %v1206
        %1372 = vadd.xlane.f32.xlu0 %v1371
        %v1373 = vpop.xlane.xlu0 %1372
        %v1374 = vadd.f32 %v1207, %v1208
        %v1375 = vadd.f32 %v1374, %v1209
        %v1376 = vadd.f32 %v1375, %v1210
        %v1377 = vadd.f32 %v1376, %v1211
        %v1378 = vadd.f32 %v1377, %v1212
        %1379 = vadd.xlane.f32.xlu0 %v1378
        %v1380 = vpop.xlane.xlu0 %1379
        %v1381 = vmul.f32 %v1219, %v900
        %v1382 = vmul.f32 %v1226, %v900
        %v1383 = vmul.f32 %v1233, %v900
        %v1384 = vmul.f32 %v1240, %v900
        %v1385 = vmul.f32 %v1247, %v900
        %v1386 = vmul.f32 %v1254, %v900
        %v1387 = vmul.f32 %v1261, %v900
        %v1388 = vmul.f32 %v1268, %v900
        %v1389 = vmul.f32 %v1275, %v900
        %v1390 = vmul.f32 %v1282, %v900
        %v1391 = vmul.f32 %v1289, %v900
        %v1392 = vmul.f32 %v1296, %v900
        %v1393 = vmul.f32 %v1303, %v900
        %v1394 = vmul.f32 %v1310, %v900
        %v1395 = vmul.f32 %v1317, %v900
        %v1396 = vmul.f32 %v1324, %v900
        %v1397 = vmul.f32 %v1331, %v900
        %v1398 = vmul.f32 %v1338, %v900
        %v1399 = vmul.f32 %v1345, %v900
        %v1400 = vmul.f32 %v1352, %v900
        %v1401 = vmul.f32 %v1359, %v900
        %v1402 = vmul.f32 %v1366, %v900
        %v1403 = vmul.f32 %v1373, %v900
        %v1404 = vmul.f32 %v1380, %v900
        %v1405 = vadd.f32 %v1381, 1e-12
        %v1406 = vadd.f32 %v1382, 1e-12
        %v1407 = vadd.f32 %v1383, 1e-12
        %v1408 = vadd.f32 %v1384, 1e-12
        %v1409 = vadd.f32 %v1385, 1e-12
        %v1410 = vadd.f32 %v1386, 1e-12
        %v1411 = vadd.f32 %v1387, 1e-12
        %v1412 = vadd.f32 %v1388, 1e-12
        %v1413 = vadd.f32 %v1389, 1e-12
        %v1414 = vadd.f32 %v1390, 1e-12
        %v1415 = vadd.f32 %v1391, 1e-12
        %v1416 = vadd.f32 %v1392, 1e-12
        %v1417 = vadd.f32 %v1393, 1e-12
        %v1418 = vadd.f32 %v1394, 1e-12
        %v1419 = vadd.f32 %v1395, 1e-12
        %v1420 = vadd.f32 %v1396, 1e-12
        %v1421 = vadd.f32 %v1397, 1e-12
        %v1422 = vadd.f32 %v1398, 1e-12
        %v1423 = vadd.f32 %v1399, 1e-12
        %v1424 = vadd.f32 %v1400, 1e-12
        %v1425 = vadd.f32 %v1401, 1e-12
        %v1426 = vadd.f32 %v1402, 1e-12
        %v1427 = vadd.f32 %v1403, 1e-12
        %v1428 = vadd.f32 %v1404, 1e-12
        %v1429 = vrsqrt.pop %v1405
        %v1430 = vmul.f32 %v1429, %v1405
        %v1431 = vmul.f32 %v1430, %v1429
        %v1432 = vmul.f32 0.5, %v1431
        %v1433 = vsub.f32 1.5, %v1432
        %v1434 = vmul.f32 %v1429, %v1433
        %vm1435 = vweird.f32 %v1405
        %vm1436 = vweird.f32 %v1429
        %vm1437 = vmor %vm1435, %vm1436
        %v1438 = vsel %vm1437, %v1429, %v1434
        %v1439 = vrsqrt.pop %v1406
        %v1440 = vmul.f32 %v1439, %v1406
        %v1441 = vmul.f32 %v1440, %v1439
        %v1442 = vmul.f32 0.5, %v1441
        %v1443 = vsub.f32 1.5, %v1442
        %v1444 = vmul.f32 %v1439, %v1443
        %vm1445 = vweird.f32 %v1406
        %vm1446 = vweird.f32 %v1439
        %vm1447 = vmor %vm1445, %vm1446
        %v1448 = vsel %vm1447, %v1439, %v1444
        %v1449 = vrsqrt.pop %v1407
        %v1450 = vmul.f32 %v1449, %v1407
        %v1451 = vmul.f32 %v1450, %v1449
        %v1452 = vmul.f32 0.5, %v1451
        %v1453 = vsub.f32 1.5, %v1452
        %v1454 = vmul.f32 %v1449, %v1453
        %vm1455 = vweird.f32 %v1407
        %vm1456 = vweird.f32 %v1449
        %vm1457 = vmor %vm1455, %vm1456
        %v1458 = vsel %vm1457, %v1449, %v1454
        %v1459 = vrsqrt.pop %v1408
        %v1460 = vmul.f32 %v1459, %v1408
        %v1461 = vmul.f32 %v1460, %v1459
        %v1462 = vmul.f32 0.5, %v1461
        %v1463 = vsub.f32 1.5, %v1462
        %v1464 = vmul.f32 %v1459, %v1463
        %vm1465 = vweird.f32 %v1408
        %vm1466 = vweird.f32 %v1459
        %vm1467 = vmor %vm1465, %vm1466
        %v1468 = vsel %vm1467, %v1459, %v1464
        %v1469 = vrsqrt.pop %v1409
        %v1470 = vmul.f32 %v1469, %v1409
        %v1471 = vmul.f32 %v1470, %v1469
        %v1472 = vmul.f32 0.5, %v1471
        %v1473 = vsub.f32 1.5, %v1472
        %v1474 = vmul.f32 %v1469, %v1473
        %vm1475 = vweird.f32 %v1409
        %vm1476 = vweird.f32 %v1469
        %vm1477 = vmor %vm1475, %vm1476
        %v1478 = vsel %vm1477, %v1469, %v1474
        %v1479 = vrsqrt.pop %v1410
        %v1480 = vmul.f32 %v1479, %v1410
        %v1481 = vmul.f32 %v1480, %v1479
        %v1482 = vmul.f32 0.5, %v1481
        %v1483 = vsub.f32 1.5, %v1482
        %v1484 = vmul.f32 %v1479, %v1483
        %vm1485 = vweird.f32 %v1410
        %vm1486 = vweird.f32 %v1479
        %vm1487 = vmor %vm1485, %vm1486
        %v1488 = vsel %vm1487, %v1479, %v1484
        %v1489 = vrsqrt.pop %v1411
        %v1490 = vmul.f32 %v1489, %v1411
        %v1491 = vmul.f32 %v1490, %v1489
        %v1492 = vmul.f32 0.5, %v1491
        %v1493 = vsub.f32 1.5, %v1492
        %v1494 = vmul.f32 %v1489, %v1493
        %vm1495 = vweird.f32 %v1411
        %vm1496 = vweird.f32 %v1489
        %vm1497 = vmor %vm1495, %vm1496
        %v1498 = vsel %vm1497, %v1489, %v1494
        %v1499 = vrsqrt.pop %v1412
        %v1500 = vmul.f32 %v1499, %v1412
        %v1501 = vmul.f32 %v1500, %v1499
        %v1502 = vmul.f32 0.5, %v1501
        %v1503 = vsub.f32 1.5, %v1502
        %v1504 = vmul.f32 %v1499, %v1503
        %vm1505 = vweird.f32 %v1412
        %vm1506 = vweird.f32 %v1499
        %vm1507 = vmor %vm1505, %vm1506
        %v1508 = vsel %vm1507, %v1499, %v1504
        %v1509 = vrsqrt.pop %v1413
        %v1510 = vmul.f32 %v1509, %v1413
        %v1511 = vmul.f32 %v1510, %v1509
        %v1512 = vmul.f32 0.5, %v1511
        %v1513 = vsub.f32 1.5, %v1512
        %v1514 = vmul.f32 %v1509, %v1513
        %vm1515 = vweird.f32 %v1413
        %vm1516 = vweird.f32 %v1509
        %vm1517 = vmor %vm1515, %vm1516
        %v1518 = vsel %vm1517, %v1509, %v1514
        %v1519 = vrsqrt.pop %v1414
        %v1520 = vmul.f32 %v1519, %v1414
        %v1521 = vmul.f32 %v1520, %v1519
        %v1522 = vmul.f32 0.5, %v1521
        %v1523 = vsub.f32 1.5, %v1522
        %v1524 = vmul.f32 %v1519, %v1523
        %vm1525 = vweird.f32 %v1414
        %vm1526 = vweird.f32 %v1519
        %vm1527 = vmor %vm1525, %vm1526
        %v1528 = vsel %vm1527, %v1519, %v1524
        %v1529 = vrsqrt.pop %v1415
        %v1530 = vmul.f32 %v1529, %v1415
        %v1531 = vmul.f32 %v1530, %v1529
        %v1532 = vmul.f32 0.5, %v1531
        %v1533 = vsub.f32 1.5, %v1532
        %v1534 = vmul.f32 %v1529, %v1533
        %vm1535 = vweird.f32 %v1415
        %vm1536 = vweird.f32 %v1529
        %vm1537 = vmor %vm1535, %vm1536
        %v1538 = vsel %vm1537, %v1529, %v1534
        %v1539 = vrsqrt.pop %v1416
        %v1540 = vmul.f32 %v1539, %v1416
        %v1541 = vmul.f32 %v1540, %v1539
        %v1542 = vmul.f32 0.5, %v1541
        %v1543 = vsub.f32 1.5, %v1542
        %v1544 = vmul.f32 %v1539, %v1543
        %vm1545 = vweird.f32 %v1416
        %vm1546 = vweird.f32 %v1539
        %vm1547 = vmor %vm1545, %vm1546
        %v1548 = vsel %vm1547, %v1539, %v1544
        %v1549 = vrsqrt.pop %v1417
        %v1550 = vmul.f32 %v1549, %v1417
        %v1551 = vmul.f32 %v1550, %v1549
        %v1552 = vmul.f32 0.5, %v1551
        %v1553 = vsub.f32 1.5, %v1552
        %v1554 = vmul.f32 %v1549, %v1553
        %vm1555 = vweird.f32 %v1417
        %vm1556 = vweird.f32 %v1549
        %vm1557 = vmor %vm1555, %vm1556
        %v1558 = vsel %vm1557, %v1549, %v1554
        %v1559 = vrsqrt.pop %v1418
        %v1560 = vmul.f32 %v1559, %v1418
        %v1561 = vmul.f32 %v1560, %v1559
        %v1562 = vmul.f32 0.5, %v1561
        %v1563 = vsub.f32 1.5, %v1562
        %v1564 = vmul.f32 %v1559, %v1563
        %vm1565 = vweird.f32 %v1418
        %vm1566 = vweird.f32 %v1559
        %vm1567 = vmor %vm1565, %vm1566
        %v1568 = vsel %vm1567, %v1559, %v1564
        %v1569 = vrsqrt.pop %v1419
        %v1570 = vmul.f32 %v1569, %v1419
        %v1571 = vmul.f32 %v1570, %v1569
        %v1572 = vmul.f32 0.5, %v1571
        %v1573 = vsub.f32 1.5, %v1572
        %v1574 = vmul.f32 %v1569, %v1573
        %vm1575 = vweird.f32 %v1419
        %vm1576 = vweird.f32 %v1569
        %vm1577 = vmor %vm1575, %vm1576
        %v1578 = vsel %vm1577, %v1569, %v1574
        %v1579 = vrsqrt.pop %v1420
        %v1580 = vmul.f32 %v1579, %v1420
        %v1581 = vmul.f32 %v1580, %v1579
        %v1582 = vmul.f32 0.5, %v1581
        %v1583 = vsub.f32 1.5, %v1582
        %v1584 = vmul.f32 %v1579, %v1583
        %vm1585 = vweird.f32 %v1420
        %vm1586 = vweird.f32 %v1579
        %vm1587 = vmor %vm1585, %vm1586
        %v1588 = vsel %vm1587, %v1579, %v1584
        %v1589 = vrsqrt.pop %v1421
        %v1590 = vmul.f32 %v1589, %v1421
        %v1591 = vmul.f32 %v1590, %v1589
        %v1592 = vmul.f32 0.5, %v1591
        %v1593 = vsub.f32 1.5, %v1592
        %v1594 = vmul.f32 %v1589, %v1593
        %vm1595 = vweird.f32 %v1421
        %vm1596 = vweird.f32 %v1589
        %vm1597 = vmor %vm1595, %vm1596
        %v1598 = vsel %vm1597, %v1589, %v1594
        %v1599 = vrsqrt.pop %v1422
        %v1600 = vmul.f32 %v1599, %v1422
        %v1601 = vmul.f32 %v1600, %v1599
        %v1602 = vmul.f32 0.5, %v1601
        %v1603 = vsub.f32 1.5, %v1602
        %v1604 = vmul.f32 %v1599, %v1603
        %vm1605 = vweird.f32 %v1422
        %vm1606 = vweird.f32 %v1599
        %vm1607 = vmor %vm1605, %vm1606
        %v1608 = vsel %vm1607, %v1599, %v1604
        %v1609 = vrsqrt.pop %v1423
        %v1610 = vmul.f32 %v1609, %v1423
        %v1611 = vmul.f32 %v1610, %v1609
        %v1612 = vmul.f32 0.5, %v1611
        %v1613 = vsub.f32 1.5, %v1612
        %v1614 = vmul.f32 %v1609, %v1613
        %vm1615 = vweird.f32 %v1423
        %vm1616 = vweird.f32 %v1609
        %vm1617 = vmor %vm1615, %vm1616
        %v1618 = vsel %vm1617, %v1609, %v1614
        %v1619 = vrsqrt.pop %v1424
        %v1620 = vmul.f32 %v1619, %v1424
        %v1621 = vmul.f32 %v1620, %v1619
        %v1622 = vmul.f32 0.5, %v1621
        %v1623 = vsub.f32 1.5, %v1622
        %v1624 = vmul.f32 %v1619, %v1623
        %vm1625 = vweird.f32 %v1424
        %vm1626 = vweird.f32 %v1619
        %vm1627 = vmor %vm1625, %vm1626
        %v1628 = vsel %vm1627, %v1619, %v1624
        %v1629 = vrsqrt.pop %v1425
        %v1630 = vmul.f32 %v1629, %v1425
        %v1631 = vmul.f32 %v1630, %v1629
        %v1632 = vmul.f32 0.5, %v1631
        %v1633 = vsub.f32 1.5, %v1632
        %v1634 = vmul.f32 %v1629, %v1633
        %vm1635 = vweird.f32 %v1425
        %vm1636 = vweird.f32 %v1629
        %vm1637 = vmor %vm1635, %vm1636
        %v1638 = vsel %vm1637, %v1629, %v1634
        %v1639 = vrsqrt.pop %v1426
        %v1640 = vmul.f32 %v1639, %v1426
        %v1641 = vmul.f32 %v1640, %v1639
        %v1642 = vmul.f32 0.5, %v1641
        %v1643 = vsub.f32 1.5, %v1642
        %v1644 = vmul.f32 %v1639, %v1643
        %vm1645 = vweird.f32 %v1426
        %vm1646 = vweird.f32 %v1639
        %vm1647 = vmor %vm1645, %vm1646
        %v1648 = vsel %vm1647, %v1639, %v1644
        %v1649 = vrsqrt.pop %v1427
        %v1650 = vmul.f32 %v1649, %v1427
        %v1651 = vmul.f32 %v1650, %v1649
        %v1652 = vmul.f32 0.5, %v1651
        %v1653 = vsub.f32 1.5, %v1652
        %v1654 = vmul.f32 %v1649, %v1653
        %vm1655 = vweird.f32 %v1427
        %vm1656 = vweird.f32 %v1649
        %vm1657 = vmor %vm1655, %vm1656
        %v1658 = vsel %vm1657, %v1649, %v1654
        %v1659 = vrsqrt.pop %v1428
        %v1660 = vmul.f32 %v1659, %v1428
        %v1661 = vmul.f32 %v1660, %v1659
        %v1662 = vmul.f32 0.5, %v1661
        %v1663 = vsub.f32 1.5, %v1662
        %v1664 = vmul.f32 %v1659, %v1663
        %vm1665 = vweird.f32 %v1428
        %vm1666 = vweird.f32 %v1659
        %vm1667 = vmor %vm1665, %vm1666
        %v1668 = vsel %vm1667, %v1659, %v1664
        %v1669 = vmul.f32 %v925, %v1438
        %v1670 = vmul.f32 %v926, %v1438
        %v1671 = vmul.f32 %v927, %v1438
        %v1672 = vmul.f32 %v928, %v1438
        %v1673 = vmul.f32 %v929, %v1438
        %v1674 = vmul.f32 %v930, %v1438
        %v1675 = vmul.f32 %v931, %v1448
        %v1676 = vmul.f32 %v932, %v1448
        %v1677 = vmul.f32 %v933, %v1448
        %v1678 = vmul.f32 %v934, %v1448
        %v1679 = vmul.f32 %v935, %v1448
        %v1680 = vmul.f32 %v936, %v1448
        %v1681 = vmul.f32 %v937, %v1458
        %v1682 = vmul.f32 %v938, %v1458
        %v1683 = vmul.f32 %v939, %v1458
        %v1684 = vmul.f32 %v940, %v1458
        %v1685 = vmul.f32 %v941, %v1458
        %v1686 = vmul.f32 %v942, %v1458
        %v1687 = vmul.f32 %v943, %v1468
        %v1688 = vmul.f32 %v944, %v1468
        %v1689 = vmul.f32 %v945, %v1468
        %v1690 = vmul.f32 %v946, %v1468
        %v1691 = vmul.f32 %v947, %v1468
        %v1692 = vmul.f32 %v948, %v1468
        %v1693 = vmul.f32 %v949, %v1478
        %v1694 = vmul.f32 %v950, %v1478
        %v1695 = vmul.f32 %v951, %v1478
        %v1696 = vmul.f32 %v952, %v1478
        %v1697 = vmul.f32 %v953, %v1478
        %v1698 = vmul.f32 %v954, %v1478
        %v1699 = vmul.f32 %v955, %v1488
        %v1700 = vmul.f32 %v956, %v1488
        %v1701 = vmul.f32 %v957, %v1488
        %v1702 = vmul.f32 %v958, %v1488
        %v1703 = vmul.f32 %v959, %v1488
        %v1704 = vmul.f32 %v960, %v1488
        %v1705 = vmul.f32 %v961, %v1498
        %v1706 = vmul.f32 %v962, %v1498
        %v1707 = vmul.f32 %v963, %v1498
        %v1708 = vmul.f32 %v964, %v1498
        %v1709 = vmul.f32 %v965, %v1498
        %v1710 = vmul.f32 %v966, %v1498
        %v1711 = vmul.f32 %v967, %v1508
        %v1712 = vmul.f32 %v968, %v1508
        %v1713 = vmul.f32 %v969, %v1508
        %v1714 = vmul.f32 %v970, %v1508
        %v1715 = vmul.f32 %v971, %v1508
        %v1716 = vmul.f32 %v972, %v1508
        %v1717 = vmul.f32 %v973, %v1518
        %v1718 = vmul.f32 %v974, %v1518
        %v1719 = vmul.f32 %v975, %v1518
        %v1720 = vmul.f32 %v976, %v1518
        %v1721 = vmul.f32 %v977, %v1518
        %v1722 = vmul.f32 %v978, %v1518
        %v1723 = vmul.f32 %v979, %v1528
        %v1724 = vmul.f32 %v980, %v1528
        %v1725 = vmul.f32 %v981, %v1528
        %v1726 = vmul.f32 %v982, %v1528
        %v1727 = vmul.f32 %v983, %v1528
        %v1728 = vmul.f32 %v984, %v1528
        %v1729 = vmul.f32 %v985, %v1538
        %v1730 = vmul.f32 %v986, %v1538
        %v1731 = vmul.f32 %v987, %v1538
        %v1732 = vmul.f32 %v988, %v1538
        %v1733 = vmul.f32 %v989, %v1538
        %v1734 = vmul.f32 %v990, %v1538
        %v1735 = vmul.f32 %v991, %v1548
        %v1736 = vmul.f32 %v992, %v1548
        %v1737 = vmul.f32 %v993, %v1548
        %v1738 = vmul.f32 %v994, %v1548
        %v1739 = vmul.f32 %v995, %v1548
        %v1740 = vmul.f32 %v996, %v1548
        %v1741 = vmul.f32 %v997, %v1558
        %v1742 = vmul.f32 %v998, %v1558
        %v1743 = vmul.f32 %v999, %v1558
        %v1744 = vmul.f32 %v1000, %v1558
        %v1745 = vmul.f32 %v1001, %v1558
        %v1746 = vmul.f32 %v1002, %v1558
        %v1747 = vmul.f32 %v1003, %v1568
        %v1748 = vmul.f32 %v1004, %v1568
        %v1749 = vmul.f32 %v1005, %v1568
        %v1750 = vmul.f32 %v1006, %v1568
        %v1751 = vmul.f32 %v1007, %v1568
        %v1752 = vmul.f32 %v1008, %v1568
        %v1753 = vmul.f32 %v1009, %v1578
        %v1754 = vmul.f32 %v1010, %v1578
        %v1755 = vmul.f32 %v1011, %v1578
        %v1756 = vmul.f32 %v1012, %v1578
        %v1757 = vmul.f32 %v1013, %v1578
        %v1758 = vmul.f32 %v1014, %v1578
        %v1759 = vmul.f32 %v1015, %v1588
        %v1760 = vmul.f32 %v1016, %v1588
        %v1761 = vmul.f32 %v1017, %v1588
        %v1762 = vmul.f32 %v1018, %v1588
        %v1763 = vmul.f32 %v1019, %v1588
        %v1764 = vmul.f32 %v1020, %v1588
        %v1765 = vmul.f32 %v1021, %v1598
        %v1766 = vmul.f32 %v1022, %v1598
        %v1767 = vmul.f32 %v1023, %v1598
        %v1768 = vmul.f32 %v1024, %v1598
        %v1769 = vmul.f32 %v1025, %v1598
        %v1770 = vmul.f32 %v1026, %v1598
        %v1771 = vmul.f32 %v1027, %v1608
        %v1772 = vmul.f32 %v1028, %v1608
        %v1773 = vmul.f32 %v1029, %v1608
        %v1774 = vmul.f32 %v1030, %v1608
        %v1775 = vmul.f32 %v1031, %v1608
        %v1776 = vmul.f32 %v1032, %v1608
        %v1777 = vmul.f32 %v1033, %v1618
        %v1778 = vmul.f32 %v1034, %v1618
        %v1779 = vmul.f32 %v1035, %v1618
        %v1780 = vmul.f32 %v1036, %v1618
        %v1781 = vmul.f32 %v1037, %v1618
        %v1782 = vmul.f32 %v1038, %v1618
        %v1783 = vmul.f32 %v1039, %v1628
        %v1784 = vmul.f32 %v1040, %v1628
        %v1785 = vmul.f32 %v1041, %v1628
        %v1786 = vmul.f32 %v1042, %v1628
        %v1787 = vmul.f32 %v1043, %v1628
        %v1788 = vmul.f32 %v1044, %v1628
        %v1789 = vmul.f32 %v1045, %v1638
        %v1790 = vmul.f32 %v1046, %v1638
        %v1791 = vmul.f32 %v1047, %v1638
        %v1792 = vmul.f32 %v1048, %v1638
        %v1793 = vmul.f32 %v1049, %v1638
        %v1794 = vmul.f32 %v1050, %v1638
        %v1795 = vmul.f32 %v1051, %v1648
        %v1796 = vmul.f32 %v1052, %v1648
        %v1797 = vmul.f32 %v1053, %v1648
        %v1798 = vmul.f32 %v1054, %v1648
        %v1799 = vmul.f32 %v1055, %v1648
        %v1800 = vmul.f32 %v1056, %v1648
        %v1801 = vmul.f32 %v1057, %v1658
        %v1802 = vmul.f32 %v1058, %v1658
        %v1803 = vmul.f32 %v1059, %v1658
        %v1804 = vmul.f32 %v1060, %v1658
        %v1805 = vmul.f32 %v1061, %v1658
        %v1806 = vmul.f32 %v1062, %v1658
        %v1807 = vmul.f32 %v1063, %v1668
        %v1808 = vmul.f32 %v1064, %v1668
        %v1809 = vmul.f32 %v1065, %v1668
        %v1810 = vmul.f32 %v1066, %v1668
        %v1811 = vmul.f32 %v1067, %v1668
        %v1812 = vmul.f32 %v1068, %v1668
        %v1813 = vld [vmem:[#allocation7] sm:$0x3f]
        %v1815 = vperm.slane %v1813, 0
        %v1816 = vperm.slane %v1813, 1
        %v1817 = vperm.slane %v1813, 2
        %v1818 = vperm.slane %v1813, 3
        %v1819 = vperm.slane %v1813, 4
        %v1820 = vperm.slane %v1813, 5
        %v1827 = vmul.f32 %v1669, %v1815
        %v1828 = vmul.f32 %v1670, %v1816
        %v1829 = vmul.f32 %v1671, %v1817
        %v1830 = vmul.f32 %v1672, %v1818
        %v1831 = vmul.f32 %v1673, %v1819
        %v1832 = vmul.f32 %v1674, %v1820
        %v1833 = vmul.f32 %v1675, %v1815
        %v1834 = vmul.f32 %v1676, %v1816
        %v1835 = vmul.f32 %v1677, %v1817
        %v1836 = vmul.f32 %v1678, %v1818
        %v1837 = vmul.f32 %v1679, %v1819
        %v1838 = vmul.f32 %v1680, %v1820
        %v1839 = vmul.f32 %v1681, %v1815
        %v1840 = vmul.f32 %v1682, %v1816
        %v1841 = vmul.f32 %v1683, %v1817
        %v1842 = vmul.f32 %v1684, %v1818
        %v1843 = vmul.f32 %v1685, %v1819
        %v1844 = vmul.f32 %v1686, %v1820
        %v1845 = vmul.f32 %v1687, %v1815
        %v1846 = vmul.f32 %v1688, %v1816
        %v1847 = vmul.f32 %v1689, %v1817
        %v1848 = vmul.f32 %v1690, %v1818
        %v1849 = vmul.f32 %v1691, %v1819
        %v1850 = vmul.f32 %v1692, %v1820
        %v1851 = vmul.f32 %v1693, %v1815
        %v1852 = vmul.f32 %v1694, %v1816
        %v1853 = vmul.f32 %v1695, %v1817
        %v1854 = vmul.f32 %v1696, %v1818
        %v1855 = vmul.f32 %v1697, %v1819
        %v1856 = vmul.f32 %v1698, %v1820
        %v1857 = vmul.f32 %v1699, %v1815
        %v1858 = vmul.f32 %v1700, %v1816
        %v1859 = vmul.f32 %v1701, %v1817
        %v1860 = vmul.f32 %v1702, %v1818
        %v1861 = vmul.f32 %v1703, %v1819
        %v1862 = vmul.f32 %v1704, %v1820
        %v1863 = vmul.f32 %v1705, %v1815
        %v1864 = vmul.f32 %v1706, %v1816
        %v1865 = vmul.f32 %v1707, %v1817
        %v1866 = vmul.f32 %v1708, %v1818
        %v1867 = vmul.f32 %v1709, %v1819
        %v1868 = vmul.f32 %v1710, %v1820
        %v1869 = vmul.f32 %v1711, %v1815
        %v1870 = vmul.f32 %v1712, %v1816
        %v1871 = vmul.f32 %v1713, %v1817
        %v1872 = vmul.f32 %v1714, %v1818
        %v1873 = vmul.f32 %v1715, %v1819
        %v1874 = vmul.f32 %v1716, %v1820
        %v1875 = vmul.f32 %v1717, %v1815
        %v1876 = vmul.f32 %v1718, %v1816
        %v1877 = vmul.f32 %v1719, %v1817
        %v1878 = vmul.f32 %v1720, %v1818
        %v1879 = vmul.f32 %v1721, %v1819
        %v1880 = vmul.f32 %v1722, %v1820
        %v1881 = vmul.f32 %v1723, %v1815
        %v1882 = vmul.f32 %v1724, %v1816
        %v1883 = vmul.f32 %v1725, %v1817
        %v1884 = vmul.f32 %v1726, %v1818
        %v1885 = vmul.f32 %v1727, %v1819
        %v1886 = vmul.f32 %v1728, %v1820
        %v1887 = vmul.f32 %v1729, %v1815
        %v1888 = vmul.f32 %v1730, %v1816
        %v1889 = vmul.f32 %v1731, %v1817
        %v1890 = vmul.f32 %v1732, %v1818
        %v1891 = vmul.f32 %v1733, %v1819
        %v1892 = vmul.f32 %v1734, %v1820
        %v1893 = vmul.f32 %v1735, %v1815
        %v1894 = vmul.f32 %v1736, %v1816
        %v1895 = vmul.f32 %v1737, %v1817
        %v1896 = vmul.f32 %v1738, %v1818
        %v1897 = vmul.f32 %v1739, %v1819
        %v1898 = vmul.f32 %v1740, %v1820
        %v1899 = vmul.f32 %v1741, %v1815
        %v1900 = vmul.f32 %v1742, %v1816
        %v1901 = vmul.f32 %v1743, %v1817
        %v1902 = vmul.f32 %v1744, %v1818
        %v1903 = vmul.f32 %v1745, %v1819
        %v1904 = vmul.f32 %v1746, %v1820
        %v1905 = vmul.f32 %v1747, %v1815
        %v1906 = vmul.f32 %v1748, %v1816
        %v1907 = vmul.f32 %v1749, %v1817
        %v1908 = vmul.f32 %v1750, %v1818
        %v1909 = vmul.f32 %v1751, %v1819
        %v1910 = vmul.f32 %v1752, %v1820
        %v1911 = vmul.f32 %v1753, %v1815
        %v1912 = vmul.f32 %v1754, %v1816
        %v1913 = vmul.f32 %v1755, %v1817
        %v1914 = vmul.f32 %v1756, %v1818
        %v1915 = vmul.f32 %v1757, %v1819
        %v1916 = vmul.f32 %v1758, %v1820
        %v1917 = vmul.f32 %v1759, %v1815
        %v1918 = vmul.f32 %v1760, %v1816
        %v1919 = vmul.f32 %v1761, %v1817
        %v1920 = vmul.f32 %v1762, %v1818
        %v1921 = vmul.f32 %v1763, %v1819
        %v1922 = vmul.f32 %v1764, %v1820
        %v1923 = vmul.f32 %v1765, %v1815
        %v1924 = vmul.f32 %v1766, %v1816
        %v1925 = vmul.f32 %v1767, %v1817
        %v1926 = vmul.f32 %v1768, %v1818
        %v1927 = vmul.f32 %v1769, %v1819
        %v1928 = vmul.f32 %v1770, %v1820
        %v1929 = vmul.f32 %v1771, %v1815
        %v1930 = vmul.f32 %v1772, %v1816
        %v1931 = vmul.f32 %v1773, %v1817
        %v1932 = vmul.f32 %v1774, %v1818
        %v1933 = vmul.f32 %v1775, %v1819
        %v1934 = vmul.f32 %v1776, %v1820
        %v1935 = vmul.f32 %v1777, %v1815
        %v1936 = vmul.f32 %v1778, %v1816
        %v1937 = vmul.f32 %v1779, %v1817
        %v1938 = vmul.f32 %v1780, %v1818
        %v1939 = vmul.f32 %v1781, %v1819
        %v1940 = vmul.f32 %v1782, %v1820
        %v1941 = vmul.f32 %v1783, %v1815
        %v1942 = vmul.f32 %v1784, %v1816
        %v1943 = vmul.f32 %v1785, %v1817
        %v1944 = vmul.f32 %v1786, %v1818
        %v1945 = vmul.f32 %v1787, %v1819
        %v1946 = vmul.f32 %v1788, %v1820
        %v1947 = vmul.f32 %v1789, %v1815
        %v1948 = vmul.f32 %v1790, %v1816
        %v1949 = vmul.f32 %v1791, %v1817
        %v1950 = vmul.f32 %v1792, %v1818
        %v1951 = vmul.f32 %v1793, %v1819
        %v1952 = vmul.f32 %v1794, %v1820
        %v1953 = vmul.f32 %v1795, %v1815
        %v1954 = vmul.f32 %v1796, %v1816
        %v1955 = vmul.f32 %v1797, %v1817
        %v1956 = vmul.f32 %v1798, %v1818
        %v1957 = vmul.f32 %v1799, %v1819
        %v1958 = vmul.f32 %v1800, %v1820
        %v1959 = vmul.f32 %v1801, %v1815
        %v1960 = vmul.f32 %v1802, %v1816
        %v1961 = vmul.f32 %v1803, %v1817
        %v1962 = vmul.f32 %v1804, %v1818
        %v1963 = vmul.f32 %v1805, %v1819
        %v1964 = vmul.f32 %v1806, %v1820
        %v1965 = vmul.f32 %v1807, %v1815
        %v1966 = vmul.f32 %v1808, %v1816
        %v1967 = vmul.f32 %v1809, %v1817
        %v1968 = vmul.f32 %v1810, %v1818
        %v1969 = vmul.f32 %v1811, %v1819
        %v1970 = vmul.f32 %v1812, %v1820
        %v1971 = vld [vmem:[#allocation8] sm:$0x3f]
        %v1973 = vperm.slane %v1971, 0
        %v1974 = vperm.slane %v1971, 1
        %v1975 = vperm.slane %v1971, 2
        %v1976 = vperm.slane %v1971, 3
        %v1977 = vperm.slane %v1971, 4
        %v1978 = vperm.slane %v1971, 5
        %v1985 = vadd.f32 %v1827, %v1973
        %v1986 = vadd.f32 %v1828, %v1974
        %v1987 = vadd.f32 %v1829, %v1975
        %v1988 = vadd.f32 %v1830, %v1976
        %v1989 = vadd.f32 %v1831, %v1977
        %v1990 = vadd.f32 %v1832, %v1978
        %v1991 = vadd.f32 %v1833, %v1973
        %v1992 = vadd.f32 %v1834, %v1974
        %v1993 = vadd.f32 %v1835, %v1975
        %v1994 = vadd.f32 %v1836, %v1976
        %v1995 = vadd.f32 %v1837, %v1977
        %v1996 = vadd.f32 %v1838, %v1978
        %v1997 = vadd.f32 %v1839, %v1973
        %v1998 = vadd.f32 %v1840, %v1974
        %v1999 = vadd.f32 %v1841, %v1975
        %v2000 = vadd.f32 %v1842, %v1976
        %v2001 = vadd.f32 %v1843, %v1977
        %v2002 = vadd.f32 %v1844, %v1978
        %v2003 = vadd.f32 %v1845, %v1973
        %v2004 = vadd.f32 %v1846, %v1974
        %v2005 = vadd.f32 %v1847, %v1975
        %v2006 = vadd.f32 %v1848, %v1976
        %v2007 = vadd.f32 %v1849, %v1977
        %v2008 = vadd.f32 %v1850, %v1978
        %v2009 = vadd.f32 %v1851, %v1973
        %v2010 = vadd.f32 %v1852, %v1974
        %v2011 = vadd.f32 %v1853, %v1975
        %v2012 = vadd.f32 %v1854, %v1976
        %v2013 = vadd.f32 %v1855, %v1977
        %v2014 = vadd.f32 %v1856, %v1978
        %v2015 = vadd.f32 %v1857, %v1973
        %v2016 = vadd.f32 %v1858, %v1974
        %v2017 = vadd.f32 %v1859, %v1975
        %v2018 = vadd.f32 %v1860, %v1976
        %v2019 = vadd.f32 %v1861, %v1977
        %v2020 = vadd.f32 %v1862, %v1978
        %v2021 = vadd.f32 %v1863, %v1973
        %v2022 = vadd.f32 %v1864, %v1974
        %v2023 = vadd.f32 %v1865, %v1975
        %v2024 = vadd.f32 %v1866, %v1976
        %v2025 = vadd.f32 %v1867, %v1977
        %v2026 = vadd.f32 %v1868, %v1978
        %v2027 = vadd.f32 %v1869, %v1973
        %v2028 = vadd.f32 %v1870, %v1974
        %v2029 = vadd.f32 %v1871, %v1975
        %v2030 = vadd.f32 %v1872, %v1976
        %v2031 = vadd.f32 %v1873, %v1977
        %v2032 = vadd.f32 %v1874, %v1978
        %v2033 = vadd.f32 %v1875, %v1973
        %v2034 = vadd.f32 %v1876, %v1974
        %v2035 = vadd.f32 %v1877, %v1975
        %v2036 = vadd.f32 %v1878, %v1976
        %v2037 = vadd.f32 %v1879, %v1977
        %v2038 = vadd.f32 %v1880, %v1978
        %v2039 = vadd.f32 %v1881, %v1973
        %v2040 = vadd.f32 %v1882, %v1974
        %v2041 = vadd.f32 %v1883, %v1975
        %v2042 = vadd.f32 %v1884, %v1976
        %v2043 = vadd.f32 %v1885, %v1977
        %v2044 = vadd.f32 %v1886, %v1978
        %v2045 = vadd.f32 %v1887, %v1973
        %v2046 = vadd.f32 %v1888, %v1974
        %v2047 = vadd.f32 %v1889, %v1975
        %v2048 = vadd.f32 %v1890, %v1976
        %v2049 = vadd.f32 %v1891, %v1977
        %v2050 = vadd.f32 %v1892, %v1978
        %v2051 = vadd.f32 %v1893, %v1973
        %v2052 = vadd.f32 %v1894, %v1974
        %v2053 = vadd.f32 %v1895, %v1975
        %v2054 = vadd.f32 %v1896, %v1976
        %v2055 = vadd.f32 %v1897, %v1977
        %v2056 = vadd.f32 %v1898, %v1978
        %v2057 = vadd.f32 %v1899, %v1973
        %v2058 = vadd.f32 %v1900, %v1974
        %v2059 = vadd.f32 %v1901, %v1975
        %v2060 = vadd.f32 %v1902, %v1976
        %v2061 = vadd.f32 %v1903, %v1977
        %v2062 = vadd.f32 %v1904, %v1978
        %v2063 = vadd.f32 %v1905, %v1973
        %v2064 = vadd.f32 %v1906, %v1974
        %v2065 = vadd.f32 %v1907, %v1975
        %v2066 = vadd.f32 %v1908, %v1976
        %v2067 = vadd.f32 %v1909, %v1977
        %v2068 = vadd.f32 %v1910, %v1978
        %v2069 = vadd.f32 %v1911, %v1973
        %v2070 = vadd.f32 %v1912, %v1974
        %v2071 = vadd.f32 %v1913, %v1975
        %v2072 = vadd.f32 %v1914, %v1976
        %v2073 = vadd.f32 %v1915, %v1977
        %v2074 = vadd.f32 %v1916, %v1978
        %v2075 = vadd.f32 %v1917, %v1973
        %v2076 = vadd.f32 %v1918, %v1974
        %v2077 = vadd.f32 %v1919, %v1975
        %v2078 = vadd.f32 %v1920, %v1976
        %v2079 = vadd.f32 %v1921, %v1977
        %v2080 = vadd.f32 %v1922, %v1978
        %v2081 = vadd.f32 %v1923, %v1973
        %v2082 = vadd.f32 %v1924, %v1974
        %v2083 = vadd.f32 %v1925, %v1975
        %v2084 = vadd.f32 %v1926, %v1976
        %v2085 = vadd.f32 %v1927, %v1977
        %v2086 = vadd.f32 %v1928, %v1978
        %v2087 = vadd.f32 %v1929, %v1973
        %v2088 = vadd.f32 %v1930, %v1974
        %v2089 = vadd.f32 %v1931, %v1975
        %v2090 = vadd.f32 %v1932, %v1976
        %v2091 = vadd.f32 %v1933, %v1977
        %v2092 = vadd.f32 %v1934, %v1978
        %v2093 = vadd.f32 %v1935, %v1973
        %v2094 = vadd.f32 %v1936, %v1974
        %v2095 = vadd.f32 %v1937, %v1975
        %v2096 = vadd.f32 %v1938, %v1976
        %v2097 = vadd.f32 %v1939, %v1977
        %v2098 = vadd.f32 %v1940, %v1978
        %v2099 = vadd.f32 %v1941, %v1973
        %v2100 = vadd.f32 %v1942, %v1974
        %v2101 = vadd.f32 %v1943, %v1975
        %v2102 = vadd.f32 %v1944, %v1976
        %v2103 = vadd.f32 %v1945, %v1977
        %v2104 = vadd.f32 %v1946, %v1978
        %v2105 = vadd.f32 %v1947, %v1973
        %v2106 = vadd.f32 %v1948, %v1974
        %v2107 = vadd.f32 %v1949, %v1975
        %v2108 = vadd.f32 %v1950, %v1976
        %v2109 = vadd.f32 %v1951, %v1977
        %v2110 = vadd.f32 %v1952, %v1978
        %v2111 = vadd.f32 %v1953, %v1973
        %v2112 = vadd.f32 %v1954, %v1974
        %v2113 = vadd.f32 %v1955, %v1975
        %v2114 = vadd.f32 %v1956, %v1976
        %v2115 = vadd.f32 %v1957, %v1977
        %v2116 = vadd.f32 %v1958, %v1978
        %v2117 = vadd.f32 %v1959, %v1973
        %v2118 = vadd.f32 %v1960, %v1974
        %v2119 = vadd.f32 %v1961, %v1975
        %v2120 = vadd.f32 %v1962, %v1976
        %v2121 = vadd.f32 %v1963, %v1977
        %v2122 = vadd.f32 %v1964, %v1978
        %v2123 = vadd.f32 %v1965, %v1973
        %v2124 = vadd.f32 %v1966, %v1974
        %v2125 = vadd.f32 %v1967, %v1975
        %v2126 = vadd.f32 %v1968, %v1976
        %v2127 = vadd.f32 %v1969, %v1977
        %v2128 = vadd.f32 %v1970, %v1978
        %2129 = vst [vmem:[%s290] sm:$0xff] %v1985
        %2130 = vst [vmem:[%s290 + $0x8] sm:$0xff] %v1986
        %2131 = vst [vmem:[%s290 + $0x10] sm:$0xff] %v1987
        %2132 = vst [vmem:[%s290 + $0x18] sm:$0xff] %v1988
        %2133 = vst [vmem:[%s290 + $0x20] sm:$0xff] %v1989
        %2134 = vst [vmem:[%s290 + $0x28] sm:$0xff] %v1990
        %2135 = vst [vmem:[%s290 + $0x30] sm:$0xff] %v1991
        %2136 = vst [vmem:[%s290 + $0x38] sm:$0xff] %v1992
        %2137 = vst [vmem:[%s290 + $0x40] sm:$0xff] %v1993
        %2138 = vst [vmem:[%s290 + $0x48] sm:$0xff] %v1994
        %2139 = vst [vmem:[%s290 + $0x50] sm:$0xff] %v1995
        %2140 = vst [vmem:[%s290 + $0x58] sm:$0xff] %v1996
        %2141 = vst [vmem:[%s290 + $0x60] sm:$0xff] %v1997
        %2142 = vst [vmem:[%s290 + $0x68] sm:$0xff] %v1998
        %2143 = vst [vmem:[%s290 + $0x70] sm:$0xff] %v1999
        %2144 = vst [vmem:[%s290 + $0x78] sm:$0xff] %v2000
        %2145 = vst [vmem:[%s290 + $0x80] sm:$0xff] %v2001
        %2146 = vst [vmem:[%s290 + $0x88] sm:$0xff] %v2002
        %2147 = vst [vmem:[%s290 + $0x90] sm:$0xff] %v2003
        %2148 = vst [vmem:[%s290 + $0x98] sm:$0xff] %v2004
        %2149 = vst [vmem:[%s290 + $0xa0] sm:$0xff] %v2005
        %2150 = vst [vmem:[%s290 + $0xa8] sm:$0xff] %v2006
        %2151 = vst [vmem:[%s290 + $0xb0] sm:$0xff] %v2007
        %2152 = vst [vmem:[%s290 + $0xb8] sm:$0xff] %v2008
        %2153 = vst [vmem:[%s290 + $0xc0] sm:$0xff] %v2009
        %2154 = vst [vmem:[%s290 + $0xc8] sm:$0xff] %v2010
        %2155 = vst [vmem:[%s290 + $0xd0] sm:$0xff] %v2011
        %2156 = vst [vmem:[%s290 + $0xd8] sm:$0xff] %v2012
        %2157 = vst [vmem:[%s290 + $0xe0] sm:$0xff] %v2013
        %2158 = vst [vmem:[%s290 + $0xe8] sm:$0xff] %v2014
        %2159 = vst [vmem:[%s290 + $0xf0] sm:$0xff] %v2015
        %2160 = vst [vmem:[%s290 + $0xf8] sm:$0xff] %v2016
        %2161 = vst [vmem:[%s290 + $0x100] sm:$0xff] %v2017
        %2162 = vst [vmem:[%s290 + $0x108] sm:$0xff] %v2018
        %2163 = vst [vmem:[%s290 + $0x110] sm:$0xff] %v2019
        %2164 = vst [vmem:[%s290 + $0x118] sm:$0xff] %v2020
        %2165 = vst [vmem:[%s290 + $0x120] sm:$0xff] %v2021
        %2166 = vst [vmem:[%s290 + $0x128] sm:$0xff] %v2022
        %2167 = vst [vmem:[%s290 + $0x130] sm:$0xff] %v2023
        %2168 = vst [vmem:[%s290 + $0x138] sm:$0xff] %v2024
        %2169 = vst [vmem:[%s290 + $0x140] sm:$0xff] %v2025
        %2170 = vst [vmem:[%s290 + $0x148] sm:$0xff] %v2026
        %2171 = vst [vmem:[%s290 + $0x150] sm:$0xff] %v2027
        %2172 = vst [vmem:[%s290 + $0x158] sm:$0xff] %v2028
        %2173 = vst [vmem:[%s290 + $0x160] sm:$0xff] %v2029
        %2174 = vst [vmem:[%s290 + $0x168] sm:$0xff] %v2030
        %2175 = vst [vmem:[%s290 + $0x170] sm:$0xff] %v2031
        %2176 = vst [vmem:[%s290 + $0x178] sm:$0xff] %v2032
        %2177 = vst [vmem:[%s290 + $0x180] sm:$0xff] %v2033
        %2178 = vst [vmem:[%s290 + $0x188] sm:$0xff] %v2034
        %2179 = vst [vmem:[%s290 + $0x190] sm:$0xff] %v2035
        %2180 = vst [vmem:[%s290 + $0x198] sm:$0xff] %v2036
        %2181 = vst [vmem:[%s290 + $0x1a0] sm:$0xff] %v2037
        %2182 = vst [vmem:[%s290 + $0x1a8] sm:$0xff] %v2038
        %2183 = vst [vmem:[%s290 + $0x1b0] sm:$0xff] %v2039
        %2184 = vst [vmem:[%s290 + $0x1b8] sm:$0xff] %v2040
        %2185 = vst [vmem:[%s290 + $0x1c0] sm:$0xff] %v2041
        %2186 = vst [vmem:[%s290 + $0x1c8] sm:$0xff] %v2042
        %2187 = vst [vmem:[%s290 + $0x1d0] sm:$0xff] %v2043
        %2188 = vst [vmem:[%s290 + $0x1d8] sm:$0xff] %v2044
        %2189 = vst [vmem:[%s290 + $0x1e0] sm:$0xff] %v2045
        %2190 = vst [vmem:[%s290 + $0x1e8] sm:$0xff] %v2046
        %2191 = vst [vmem:[%s290 + $0x1f0] sm:$0xff] %v2047
        %2192 = vst [vmem:[%s290 + $0x1f8] sm:$0xff] %v2048
        %2193 = vst [vmem:[%s290 + $0x200] sm:$0xff] %v2049
        %2194 = vst [vmem:[%s290 + $0x208] sm:$0xff] %v2050
        %2195 = vst [vmem:[%s290 + $0x210] sm:$0xff] %v2051
        %2196 = vst [vmem:[%s290 + $0x218] sm:$0xff] %v2052
        %2197 = vst [vmem:[%s290 + $0x220] sm:$0xff] %v2053
        %2198 = vst [vmem:[%s290 + $0x228] sm:$0xff] %v2054
        %2199 = vst [vmem:[%s290 + $0x230] sm:$0xff] %v2055
        %2200 = vst [vmem:[%s290 + $0x238] sm:$0xff] %v2056
        %2201 = vst [vmem:[%s290 + $0x240] sm:$0xff] %v2057
        %2202 = vst [vmem:[%s290 + $0x248] sm:$0xff] %v2058
        %2203 = vst [vmem:[%s290 + $0x250] sm:$0xff] %v2059
        %2204 = vst [vmem:[%s290 + $0x258] sm:$0xff] %v2060
        %2205 = vst [vmem:[%s290 + $0x260] sm:$0xff] %v2061
        %2206 = vst [vmem:[%s290 + $0x268] sm:$0xff] %v2062
        %2207 = vst [vmem:[%s290 + $0x270] sm:$0xff] %v2063
        %2208 = vst [vmem:[%s290 + $0x278] sm:$0xff] %v2064
        %2209 = vst [vmem:[%s290 + $0x280] sm:$0xff] %v2065
        %2210 = vst [vmem:[%s290 + $0x288] sm:$0xff] %v2066
        %2211 = vst [vmem:[%s290 + $0x290] sm:$0xff] %v2067
        %2212 = vst [vmem:[%s290 + $0x298] sm:$0xff] %v2068
        %2213 = vst [vmem:[%s290 + $0x2a0] sm:$0xff] %v2069
        %2214 = vst [vmem:[%s290 + $0x2a8] sm:$0xff] %v2070
        %2215 = vst [vmem:[%s290 + $0x2b0] sm:$0xff] %v2071
        %2216 = vst [vmem:[%s290 + $0x2b8] sm:$0xff] %v2072
        %2217 = vst [vmem:[%s290 + $0x2c0] sm:$0xff] %v2073
        %2218 = vst [vmem:[%s290 + $0x2c8] sm:$0xff] %v2074
        %2219 = vst [vmem:[%s290 + $0x2d0] sm:$0xff] %v2075
        %2220 = vst [vmem:[%s290 + $0x2d8] sm:$0xff] %v2076
        %2221 = vst [vmem:[%s290 + $0x2e0] sm:$0xff] %v2077
        %2222 = vst [vmem:[%s290 + $0x2e8] sm:$0xff] %v2078
        %2223 = vst [vmem:[%s290 + $0x2f0] sm:$0xff] %v2079
        %2224 = vst [vmem:[%s290 + $0x2f8] sm:$0xff] %v2080
        %2225 = vst [vmem:[%s290 + $0x300] sm:$0xff] %v2081
        %2226 = vst [vmem:[%s290 + $0x308] sm:$0xff] %v2082
        %2227 = vst [vmem:[%s290 + $0x310] sm:$0xff] %v2083
        %2228 = vst [vmem:[%s290 + $0x318] sm:$0xff] %v2084
        %2229 = vst [vmem:[%s290 + $0x320] sm:$0xff] %v2085
        %2230 = vst [vmem:[%s290 + $0x328] sm:$0xff] %v2086
        %2231 = vst [vmem:[%s290 + $0x330] sm:$0xff] %v2087
        %2232 = vst [vmem:[%s290 + $0x338] sm:$0xff] %v2088
        %2233 = vst [vmem:[%s290 + $0x340] sm:$0xff] %v2089
        %2234 = vst [vmem:[%s290 + $0x348] sm:$0xff] %v2090
        %2235 = vst [vmem:[%s290 + $0x350] sm:$0xff] %v2091
        %2236 = vst [vmem:[%s290 + $0x358] sm:$0xff] %v2092
        %2237 = vst [vmem:[%s290 + $0x360] sm:$0xff] %v2093
        %2238 = vst [vmem:[%s290 + $0x368] sm:$0xff] %v2094
        %2239 = vst [vmem:[%s290 + $0x370] sm:$0xff] %v2095
        %2240 = vst [vmem:[%s290 + $0x378] sm:$0xff] %v2096
        %2241 = vst [vmem:[%s290 + $0x380] sm:$0xff] %v2097
        %2242 = vst [vmem:[%s290 + $0x388] sm:$0xff] %v2098
        %2243 = vst [vmem:[%s290 + $0x390] sm:$0xff] %v2099
        %2244 = vst [vmem:[%s290 + $0x398] sm:$0xff] %v2100
        %2245 = vst [vmem:[%s290 + $0x3a0] sm:$0xff] %v2101
        %2246 = vst [vmem:[%s290 + $0x3a8] sm:$0xff] %v2102
        %2247 = vst [vmem:[%s290 + $0x3b0] sm:$0xff] %v2103
        %2248 = vst [vmem:[%s290 + $0x3b8] sm:$0xff] %v2104
        %2249 = vst [vmem:[%s290 + $0x3c0] sm:$0xff] %v2105
        %2250 = vst [vmem:[%s290 + $0x3c8] sm:$0xff] %v2106
        %2251 = vst [vmem:[%s290 + $0x3d0] sm:$0xff] %v2107
        %2252 = vst [vmem:[%s290 + $0x3d8] sm:$0xff] %v2108
        %2253 = vst [vmem:[%s290 + $0x3e0] sm:$0xff] %v2109
        %2254 = vst [vmem:[%s290 + $0x3e8] sm:$0xff] %v2110
        %2255 = vst [vmem:[%s290 + $0x3f0] sm:$0xff] %v2111
        %2256 = vst [vmem:[%s290 + $0x3f8] sm:$0xff] %v2112
        %2257 = vst [vmem:[%s290 + $0x400] sm:$0xff] %v2113
        %2258 = vst [vmem:[%s290 + $0x408] sm:$0xff] %v2114
        %2259 = vst [vmem:[%s290 + $0x410] sm:$0xff] %v2115
        %2260 = vst [vmem:[%s290 + $0x418] sm:$0xff] %v2116
        %2261 = vst [vmem:[%s290 + $0x420] sm:$0xff] %v2117
        %2262 = vst [vmem:[%s290 + $0x428] sm:$0xff] %v2118
        %2263 = vst [vmem:[%s290 + $0x430] sm:$0xff] %v2119
        %2264 = vst [vmem:[%s290 + $0x438] sm:$0xff] %v2120
        %2265 = vst [vmem:[%s290 + $0x440] sm:$0xff] %v2121
        %2266 = vst [vmem:[%s290 + $0x448] sm:$0xff] %v2122
        %2267 = vst [vmem:[%s290 + $0x450] sm:$0xff] %v2123
        %2268 = vst [vmem:[%s290 + $0x458] sm:$0xff] %v2124
        %2269 = vst [vmem:[%s290 + $0x460] sm:$0xff] %v2125
        %2270 = vst [vmem:[%s290 + $0x468] sm:$0xff] %v2126
        %2271 = vst [vmem:[%s290 + $0x470] sm:$0xff] %v2127
        %2272 = vst [vmem:[%s290 + $0x478] sm:$0xff] %v2128
        %s2273 = sand.u32 %s127, 1
        %s2274 = scalar_lea.sflag [#allocation4], %s2273
        %s2275 = sand.u32 %s127, 1
        %s2276 = smul.addr %s2275, 1152
        %s2277 = scalar_lea.vmem [#allocation10], %s2276
        // Predicated region
        $region53: #{tpu_custom_call.1} parent=35 // pred_check
          %p2278 = pneg %p137
        $region54: #{tpu_custom_call.1} parent=35 // pred_check_branch
          %2280 = sbr.rel (%p2278) target = $region56
        $region55: #{tpu_custom_call.1} parent=35 // pred_region
          %s2281 = smul.u32 24, %s25
          %2283 = vsyncadd %s2274, 0
          %s2284 = smul.addr %s2281, 6
          %s2285 = smul.addr %s2284, 8
          %s2286 = scalar_lea.hbm %s4, %s2285
          %s2287 = sshll.u32 %s2277, 4
          %s2288 = int_to_ptr.vmem [resolvable:$true] %s2287
          %s2289 = sshll.u32 %s2286, 4
          %s2290 = int_to_ptr.hbm [resolvable:$true] %s2289
          %2295 = dma.vmem_to_hbm [thread:$0]  %s2288, 18432, %s2290, %s2274, 768, 768, 48
        $region56: #{tpu_custom_call.1} parent=35 // pred_fallthru
          _
      $region36: #{tpu_custom_call.1} parent=5 // pred_fallthru
        _
      %p2296 = scmp.le.s32.totalorder 2, %s20
      // Predicated region
      $region57: #{tpu_custom_call.1} parent=5 // pred_check
        %p2297 = pneg %p2296
      $region58: #{tpu_custom_call.1} parent=5 // pred_check_branch
        %2299 = sbr.rel (%p2297) target = $region60
      $region59: #{tpu_custom_call.1} parent=5 // pred_region
        %s2300 = ssub.s32 %s20, 2
        // Predicated region
        $region61: #{tpu_custom_call.1} parent=59 // pred_check
          %p2301 = pneg %p143
        $region62: #{tpu_custom_call.1} parent=59 // pred_check_branch
          %2303 = sbr.rel (%p2301) target = $region64
        $region63: #{tpu_custom_call.1} parent=59 // pred_region
          %s2304 = sand.u32 %s128, 1
          %s2305 = scalar_lea.sflag [#allocation4], %s2304
          %s2306 = sand.u32 %s128, 1
          %s2307 = smul.addr %s2306, 1152
          %s2308 = scalar_lea.vmem [#allocation10], %s2307
          %2310 = dma.done %s2305, 18432
        $region64: #{tpu_custom_call.1} parent=59 // pred_fallthru
          _
      $region60: #{tpu_custom_call.1} parent=5 // pred_fallthru
        _
    $region6: #{tpu_custom_call.1} parent=1 // loop_footer
      %s24 = sadd.s32 1, %s20
    $region7: #{tpu_custom_call.1} parent=1 // loop_footer_branch
      %19 = sbr.rel target = $region3
    $region8: #{tpu_custom_call.1} parent=1 // loop_exit
      _
    %2311 = vsyncpa [#allocation3], 1
    %s2312 = scalar_lea.sflag [#allocation3], 1
    %2313 = vsyncpa %s2312, 1
    %2314 = vsyncpa [#allocation6], 1
    %s2315 = scalar_lea.sflag [#allocation6], 1
    %2316 = vsyncpa %s2315, 1
    %2317 = vsyncpa [#allocation9], 1
    %2318 = vsyncpa [#allocation4], 1
    %s2319 = scalar_lea.sflag [#allocation4], 1
    %2320 = vsyncpa %s2319, 1

</llo_original>
